<compile_context>
chip_gen: v7x
topology: tpu7x:2x2x1
jax: 0.10.0
libtpu: 0.0.40
codegen_flags: <defaults>
</compile_context>

<pallas_src>
import jax
import jax.numpy as jnp
from jax import lax
from jax.experimental import pallas as pl
from jax.experimental.pallas import tpu as pltpu

_BLK = 8  # sublane tile / store-batching factor


def lstm_kernel(embeds_ref, wih_t_ref, whh_t_ref, b_ref, wout_t_ref, bout_ref,
                out_ref, xproj_ref, hs_ref):
    T_pad = xproj_ref.shape[0]
    H = whh_t_ref.shape[0]

    # ---- Phase 1: input projection for the whole sequence in one MXU matmul (bf16 operands,
    #      f32 accumulation).  xproj[t] = embeds[t] @ W_ih^T + (b_ih + b_hh)   (i/f/o cols pre-scaled by 0.5)
    xproj_ref[...] = (
        jnp.dot(embeds_ref[...], wih_t_ref[...],
                preferred_element_type=jnp.float32)
        + b_ref[...]
    )

    # Recurrent weight loaded to vregs once, outside the serial loop.
    whh_t = whh_t_ref[...]

    n_blk = T_pad // _BLK

    # ---- Phase 2: the recurrence.  Only the true serial dependency lives per step; everything
    #      block-granular (xproj load, hs store) is hoisted to once per 8 steps.
    def block_step(blk, carry):
        h, c = carry                                   # (1, H) loop-carried vregs
        base = pl.multiple_of(blk * _BLK, _BLK)
        xp = xproj_ref[pl.ds(base, _BLK), :]           # (8, 4H) lane-dense load, off the chain
        rows = []
        for j in range(_BLK):                          # static unroll of 8 (LLO visibility)
            # gates = xproj[t] + h_{t-1} @ W_hh^T   (i/f/o columns carry the 0.5 pre-scale)
            gates = xp[j:j + 1, :] + jnp.dot(
                h, whh_t, preferred_element_type=jnp.float32)

            # Single EUP push for all four gates:
            #   g     = tanh(pre_g)            = tg[:, 2H:3H]
            #   i,f,o = sigmoid(pre)           = 0.5 * (1 + tanh(pre/2)) = 0.5 + 0.5*tg
            tg = jnp.tanh(gates)
            sg = 0.5 + 0.5 * tg
            i = sg[:, 0 * H:1 * H]
            f = sg[:, 1 * H:2 * H]
            g = tg[:, 2 * H:3 * H]
            o = sg[:, 3 * H:4 * H]

            c = f * c + i * g
            h = o * jnp.tanh(c)                        # second (and last) EUP push per step
            rows.append(h)

        # One (8, H) store per block instead of eight (1, H) masked stores on the chain.
        hs_ref[pl.ds(base, _BLK), :] = jnp.concatenate(rows, axis=0)
        return (h, c)

    h0 = jnp.zeros((1, H), jnp.float32)                # init_hidden(): zeros
    c0 = jnp.zeros((1, H), jnp.float32)
    lax.fori_loop(0, n_blk, block_step, (h0, c0), unroll=n_blk <= 8)

    # ---- Phase 3: hidden2tag + log_softmax over the whole sequence (bf16 MXU operands).
    logits = jnp.dot(hs_ref[...].astype(jnp.bfloat16), wout_t_ref[...],
                     preferred_element_type=jnp.float32) + bout_ref[...]
    m = jnp.max(logits, axis=-1, keepdims=True)
    shifted = logits - m
    lse = jnp.log(jnp.sum(jnp.exp(shifted), axis=-1, keepdims=True))
    out_ref[...] = shifted - lse                       # single store of the (T_pad, tags) slab


def _vmem_cap_bytes():
    """Generation-aware usable-VMEM cap (~54 MiB on v7x, ~108 MiB on v5e/v6e)."""
    try:
        phys = pltpu.get_tpu_info().vmem_capacity_bytes
    except Exception:
        phys = 64 << 20                                # conservative fallback (v7x per-TC)
    return int(phys * 0.85)                            # headroom for compiler internal scratch


def lstm_forward(char_idxs, params):
    """Full forward pass of LSTMModel.forward (dropout is a no-op: num_layers=1)."""
    emb_table = params["embedding"]          # (vocab, E)
    wih = params["w_ih"]                     # (4H, E)
    whh = params["w_hh"]                     # (4H, H)
    b = params["b_ih"] + params["b_hh"]      # (4H,)
    wout = params["w_out"]                   # (tags, H)
    bout = params["b_out"]                   # (tags,)

    T = char_idxs.shape[0]
    E = emb_table.shape[1]
    H = whh.shape[1]
    tags = wout.shape[0]
    T_pad = ((T + _BLK - 1) // _BLK) * _BLK

    # Fold sigmoid's half-angle rescale into the i/f/o gate columns of W_ih^T, W_hh^T and bias,
    # so the kernel needs only ONE tanh push for all four gates per step.
    gate_scale = jnp.concatenate(
        [jnp.full((1, H), 0.5, jnp.float32),       # i
         jnp.full((1, H), 0.5, jnp.float32),       # f
         jnp.ones((1, H), jnp.float32),            # g (true tanh gate)
         jnp.full((1, H), 0.5, jnp.float32)],      # o
        axis=1)
    wih_t = wih.T.astype(jnp.float32) * gate_scale        # (E, 4H)
    whh_t = whh.T.astype(jnp.float32) * gate_scale        # (H, 4H)  — stays f32 (serial chain)
    bias = b.reshape(1, 4 * H).astype(jnp.float32) * gate_scale

    # Embedding lookup (glue): gather rows of the embedding table, pad T to a multiple of 8.
    embeds = jnp.take(emb_table, char_idxs, axis=0).astype(jnp.float32)   # (T, E)
    if T_pad != T:
        embeds = jnp.pad(embeds, ((0, T_pad - T), (0, 0)))

    # VMEM accounting for the ungridded call (no BlockSpec double-buffering -> 1.3x guard).
    f32b, bf16b = 4, 2
    footprint = (T_pad * E * bf16b            # embeds
                 + E * 4 * H * bf16b          # W_ih^T
                 + H * 4 * H * f32b           # W_hh^T
                 + 4 * H * f32b               # bias
                 + H * tags * bf16b           # W_out^T
                 + tags * f32b                # b_out
                 + T_pad * tags * f32b        # output
                 + T_pad * 4 * H * f32b       # xproj scratch
                 + T_pad * H * f32b)          # hs scratch
    need = int(1.3 * footprint)
    cap = _vmem_cap_bytes()
    if need > cap:
        raise ValueError(
            "sequence too long for all-VMEM LSTM kernel on this TPU generation; "
            "chunk the projection / recurrence over T (see TODO at top of file)")
    vmem_limit = min(cap, max(32 << 20, need))

    vmem_spec = pl.BlockSpec(memory_space=pltpu.MemorySpace.VMEM)

    out = pl.pallas_call(
        lstm_kernel,
        out_shape=jax.ShapeDtypeStruct((T_pad, tags), jnp.float32),
        in_specs=[vmem_spec] * 6,
        out_specs=vmem_spec,
        scratch_shapes=[
            pltpu.VMEM((T_pad, 4 * H), jnp.float32),   # xproj (precomputed input projection)
            pltpu.VMEM((T_pad, H), jnp.float32),       # hs    (hidden-state history)
        ],
        compiler_params=pltpu.CompilerParams(vmem_limit_bytes=vmem_limit),
    )(
        embeds.astype(jnp.bfloat16),                   # bulk MXU operand -> bf16
        wih_t.astype(jnp.bfloat16),                    # (E, 4H)  bf16
        whh_t,                                         # (H, 4H)  f32 (recurrent chain)
        bias,                                          # (1, 4H)  f32
        wout.T.astype(jnp.bfloat16),                   # (H, tags) bf16
        bout.reshape(1, tags).astype(jnp.float32),
    )
    return out[:T]


def lstm_forward_ref(char_idxs, params):
    """Pure-JAX f32 reference matching torch.nn.LSTM semantics (batch=1)."""
    emb_table = params["embedding"]
    wih, whh = params["w_ih"], params["w_hh"]
    b = params["b_ih"] + params["b_hh"]
    wout, bout = params["w_out"], params["b_out"]
    H = whh.shape[1]

    embeds = jnp.take(emb_table, char_idxs, axis=0)

    def step(carry, x_t):
        h, c = carry
        gates = x_t @ wih.T + h @ whh.T + b
        i = jax.nn.sigmoid(gates[0 * H:1 * H])
        f = jax.nn.sigmoid(gates[1 * H:2 * H])
        g = jnp.tanh(gates[2 * H:3 * H])
        o = jax.nn.sigmoid(gates[3 * H:4 * H])
        c = f * c + i * g
        h = o * jnp.tanh(c)
        return (h, c), h

    h0 = jnp.zeros((H,), jnp.float32)
    c0 = jnp.zeros((H,), jnp.float32)
    _, hs = lax.scan(step, (h0, c0), embeds)
    logits = hs @ wout.T + bout
    return jax.nn.log_softmax(logits, axis=-1)


def init_params(key, vocab_size, embedding_dim, hidden_dim, tags_size):
    """Deterministic synthetic parameters (shapes match nn.Embedding/nn.LSTM/nn.Linear)."""
    ks = jax.random.split(key, 8)
    H, E = hidden_dim, embedding_dim
    s = 1.0 / jnp.sqrt(H)
    return {
        "embedding": jax.random.normal(ks[0], (vocab_size, E), jnp.float32),
        "w_ih": jax.random.uniform(ks[1], (4 * H, E), jnp.float32, -s, s),
        "w_hh": jax.random.uniform(ks[2], (4 * H, H), jnp.float32, -s, s),
        "b_ih": jax.random.uniform(ks[3], (4 * H,), jnp.float32, -s, s),
        "b_hh": jax.random.uniform(ks[4], (4 * H,), jnp.float32, -s, s),
        "w_out": jax.random.uniform(ks[5], (tags_size, H), jnp.float32, -s, s),
        "b_out": jax.random.uniform(ks[6], (tags_size,), jnp.float32, -s, s),
    }


if __name__ == "__main__":
    # Small shapes consistent with the module's forward: a sequence of T char indices,
    # embedding_dim=32, hidden_dim=32, tags_size=8.  T=13 also exercises the pad-to-8 path.
    VOCAB, E, H, TAGS, T = 64, 32, 32, 8, 13

    key = jax.random.PRNGKey(0)
    kp, kx = jax.random.split(key)
    params = init_params(kp, VOCAB, E, H, TAGS)
    char_idxs = jax.random.randint(kx, (T,), 0, VOCAB, dtype=jnp.int32)

    out = jax.block_until_ready(lstm_forward(char_idxs, params))
    ref = jax.block_until_ready(lstm_forward_ref(char_idxs, params))

    assert out.shape == (T, TAGS)
    # Tolerance loosened vs. a pure-f32 kernel: the bulk matmuls feed the MXU bf16 operands
    # (f32 accumulation), which perturbs gate pre-activations slightly.
    err = float(jnp.max(jnp.abs(out - ref)))
    assert jnp.allclose(out, ref, atol=5e-2, rtol=5e-2), f"max abs err {err}"
    print("KERNEL_OK")
</pallas_src>

<mosaic_0001>
module attributes {stable_mosaic.version = 11 : i64} {
  func.func @lstm_kernel(%arg0: memref<16x32xbf16, #tpu.memory_space<vmem>>, %arg1: memref<32x128xbf16, #tpu.memory_space<vmem>>, %arg2: memref<32x128xf32, #tpu.memory_space<vmem>>, %arg3: memref<1x128xf32, #tpu.memory_space<vmem>>, %arg4: memref<32x8xbf16, #tpu.memory_space<vmem>>, %arg5: memref<1x8xf32, #tpu.memory_space<vmem>>, %arg6: memref<16x8xf32, #tpu.memory_space<vmem>>, %arg7: memref<16x128xf32, #tpu.memory_space<vmem>>, %arg8: memref<16x32xf32, #tpu.memory_space<vmem>>) attributes {dimension_semantics = [], scalar_prefetch = 0 : i64, scratch_operands = 2 : i64, tpu.core_type = #tpu.core_type<tc>} {
    %c0 = arith.constant 0 : index
    %c0_0 = arith.constant 0 : index
    %0 = vector.load %arg0[%c0, %c0_0] : memref<16x32xbf16, #tpu.memory_space<vmem>>, vector<16x32xbf16>
    %c0_1 = arith.constant 0 : index
    %c0_2 = arith.constant 0 : index
    %1 = vector.load %arg1[%c0_1, %c0_2] : memref<32x128xbf16, #tpu.memory_space<vmem>>, vector<32x128xbf16>
    %cst = arith.constant dense<0.000000e+00> : vector<16x128xf32>
    %2 = tpu.matmul %0, %1, %cst {dimension_numbers = #tpu.dot_dimension_numbers<[1], [0], [0], [1], [0, 0, 1, 1], [], []>} : vector<16x32xbf16>, vector<32x128xbf16>, vector<16x128xf32> -> vector<16x128xf32>
    %c0_3 = arith.constant 0 : index
    %c0_4 = arith.constant 0 : index
    %3 = vector.load %arg3[%c0_3, %c0_4] : memref<1x128xf32, #tpu.memory_space<vmem>>, vector<1x128xf32>
    %4 = vector.broadcast %3 : vector<1x128xf32> to vector<16x128xf32>
    %5 = arith.addf %2, %4 : vector<16x128xf32>
    %c0_5 = arith.constant 0 : index
    %c0_6 = arith.constant 0 : index
    %6 = vector.load %arg7[%c0_5, %c0_6] : memref<16x128xf32, #tpu.memory_space<vmem>>, vector<16x128xf32>
    tpu.vector_store %arg7[%c0_5, %c0_6], %5 {strides = array<i32>} : memref<16x128xf32, #tpu.memory_space<vmem>>, vector<16x128xf32>,
    %c0_7 = arith.constant 0 : index
    %c0_8 = arith.constant 0 : index
    %7 = vector.load %arg2[%c0_7, %c0_8] : memref<32x128xf32, #tpu.memory_space<vmem>>, vector<32x128xf32>
    %cst_9 = arith.constant 0.000000e+00 : f32
    %8 = vector.broadcast %cst_9 : f32 to vector<1x32xf32>
    %cst_10 = arith.constant 0.000000e+00 : f32
    %9 = vector.broadcast %cst_10 : f32 to vector<1x32xf32>
    %c0_i32 = arith.constant 0 : i32
    %c8_i32 = arith.constant 8 : i32
    %10 = arith.muli %c0_i32, %c8_i32 : i32
    %11 = tpu.assume_multiple %10, 8 : i32
    %12 = arith.index_cast %11 : i32 to index
    %c0_11 = arith.constant 0 : index
    %13 = vector.load %arg7[%12, %c0_11] : memref<16x128xf32, #tpu.memory_space<vmem>>, vector<8x128xf32>
    %14 = vector.extract_strided_slice %13 {offsets = [0, 0], sizes = [1, 128], strides = [1, 1]} : vector<8x128xf32> to vector<1x128xf32>
    %cst_12 = arith.constant dense<0.000000e+00> : vector<1x128xf32>
    %15 = tpu.matmul %8, %7, %cst_12 {dimension_numbers = #tpu.dot_dimension_numbers<[1], [0], [0], [1], [0, 0, 1, 1], [], []>} : vector<1x32xf32>, vector<32x128xf32>, vector<1x128xf32> -> vector<1x128xf32>
    %16 = arith.addf %14, %15 : vector<1x128xf32>
    %17 = math.tanh %16 : vector<1x128xf32>
    %cst_13 = arith.constant 5.000000e-01 : f32
    %18 = vector.broadcast %cst_13 : f32 to vector<1x128xf32>
    %19 = arith.mulf %18, %17 : vector<1x128xf32>
    %cst_14 = arith.constant 5.000000e-01 : f32
    %20 = vector.broadcast %cst_14 : f32 to vector<1x128xf32>
    %21 = arith.addf %20, %19 : vector<1x128xf32>
    %22 = vector.extract_strided_slice %21 {offsets = [0, 0], sizes = [1, 32], strides = [1, 1]} : vector<1x128xf32> to vector<1x32xf32>
    %23 = vector.extract_strided_slice %21 {offsets = [0, 32], sizes = [1, 32], strides = [1, 1]} : vector<1x128xf32> to vector<1x32xf32>
    %24 = vector.extract_strided_slice %17 {offsets = [0, 64], sizes = [1, 32], strides = [1, 1]} : vector<1x128xf32> to vector<1x32xf32>
    %25 = vector.extract_strided_slice %21 {offsets = [0, 96], sizes = [1, 32], strides = [1, 1]} : vector<1x128xf32> to vector<1x32xf32>
    %26 = arith.mulf %23, %9 : vector<1x32xf32>
    %27 = arith.mulf %22, %24 : vector<1x32xf32>
    %28 = arith.addf %26, %27 : vector<1x32xf32>
    %29 = math.tanh %28 : vector<1x32xf32>
    %30 = arith.mulf %25, %29 : vector<1x32xf32>
    %31 = vector.extract_strided_slice %13 {offsets = [1, 0], sizes = [1, 128], strides = [1, 1]} : vector<8x128xf32> to vector<1x128xf32>
    %cst_15 = arith.constant dense<0.000000e+00> : vector<1x128xf32>
    %32 = tpu.matmul %30, %7, %cst_15 {dimension_numbers = #tpu.dot_dimension_numbers<[1], [0], [0], [1], [0, 0, 1, 1], [], []>} : vector<1x32xf32>, vector<32x128xf32>, vector<1x128xf32> -> vector<1x128xf32>
    %33 = arith.addf %31, %32 : vector<1x128xf32>
    %34 = math.tanh %33 : vector<1x128xf32>
    %cst_16 = arith.constant 5.000000e-01 : f32
    %35 = vector.broadcast %cst_16 : f32 to vector<1x128xf32>
    %36 = arith.mulf %35, %34 : vector<1x128xf32>
    %cst_17 = arith.constant 5.000000e-01 : f32
    %37 = vector.broadcast %cst_17 : f32 to vector<1x128xf32>
    %38 = arith.addf %37, %36 : vector<1x128xf32>
    %39 = vector.extract_strided_slice %38 {offsets = [0, 0], sizes = [1, 32], strides = [1, 1]} : vector<1x128xf32> to vector<1x32xf32>
    %40 = vector.extract_strided_slice %38 {offsets = [0, 32], sizes = [1, 32], strides = [1, 1]} : vector<1x128xf32> to vector<1x32xf32>
    %41 = vector.extract_strided_slice %34 {offsets = [0, 64], sizes = [1, 32], strides = [1, 1]} : vector<1x128xf32> to vector<1x32xf32>
    %42 = vector.extract_strided_slice %38 {offsets = [0, 96], sizes = [1, 32], strides = [1, 1]} : vector<1x128xf32> to vector<1x32xf32>
    %43 = arith.mulf %40, %28 : vector<1x32xf32>
    %44 = arith.mulf %39, %41 : vector<1x32xf32>
    %45 = arith.addf %43, %44 : vector<1x32xf32>
    %46 = math.tanh %45 : vector<1x32xf32>
    %47 = arith.mulf %42, %46 : vector<1x32xf32>
    %48 = vector.extract_strided_slice %13 {offsets = [2, 0], sizes = [1, 128], strides = [1, 1]} : vector<8x128xf32> to vector<1x128xf32>
    %cst_18 = arith.constant dense<0.000000e+00> : vector<1x128xf32>
    %49 = tpu.matmul %47, %7, %cst_18 {dimension_numbers = #tpu.dot_dimension_numbers<[1], [0], [0], [1], [0, 0, 1, 1], [], []>} : vector<1x32xf32>, vector<32x128xf32>, vector<1x128xf32> -> vector<1x128xf32>
    %50 = arith.addf %48, %49 : vector<1x128xf32>
    %51 = math.tanh %50 : vector<1x128xf32>
    %cst_19 = arith.constant 5.000000e-01 : f32
    %52 = vector.broadcast %cst_19 : f32 to vector<1x128xf32>
    %53 = arith.mulf %52, %51 : vector<1x128xf32>
    %cst_20 = arith.constant 5.000000e-01 : f32
    %54 = vector.broadcast %cst_20 : f32 to vector<1x128xf32>
    %55 = arith.addf %54, %53 : vector<1x128xf32>
    %56 = vector.extract_strided_slice %55 {offsets = [0, 0], sizes = [1, 32], strides = [1, 1]} : vector<1x128xf32> to vector<1x32xf32>
    %57 = vector.extract_strided_slice %55 {offsets = [0, 32], sizes = [1, 32], strides = [1, 1]} : vector<1x128xf32> to vector<1x32xf32>
    %58 = vector.extract_strided_slice %51 {offsets = [0, 64], sizes = [1, 32], strides = [1, 1]} : vector<1x128xf32> to vector<1x32xf32>
    %59 = vector.extract_strided_slice %55 {offsets = [0, 96], sizes = [1, 32], strides = [1, 1]} : vector<1x128xf32> to vector<1x32xf32>
    %60 = arith.mulf %57, %45 : vector<1x32xf32>
    %61 = arith.mulf %56, %58 : vector<1x32xf32>
    %62 = arith.addf %60, %61 : vector<1x32xf32>
    %63 = math.tanh %62 : vector<1x32xf32>
    %64 = arith.mulf %59, %63 : vector<1x32xf32>
    %65 = vector.extract_strided_slice %13 {offsets = [3, 0], sizes = [1, 128], strides = [1, 1]} : vector<8x128xf32> to vector<1x128xf32>
    %cst_21 = arith.constant dense<0.000000e+00> : vector<1x128xf32>
    %66 = tpu.matmul %64, %7, %cst_21 {dimension_numbers = #tpu.dot_dimension_numbers<[1], [0], [0], [1], [0, 0, 1, 1], [], []>} : vector<1x32xf32>, vector<32x128xf32>, vector<1x128xf32> -> vector<1x128xf32>
    %67 = arith.addf %65, %66 : vector<1x128xf32>
    %68 = math.tanh %67 : vector<1x128xf32>
    %cst_22 = arith.constant 5.000000e-01 : f32
    %69 = vector.broadcast %cst_22 : f32 to vector<1x128xf32>
    %70 = arith.mulf %69, %68 : vector<1x128xf32>
    %cst_23 = arith.constant 5.000000e-01 : f32
    %71 = vector.broadcast %cst_23 : f32 to vector<1x128xf32>
    %72 = arith.addf %71, %70 : vector<1x128xf32>
    %73 = vector.extract_strided_slice %72 {offsets = [0, 0], sizes = [1, 32], strides = [1, 1]} : vector<1x128xf32> to vector<1x32xf32>
    %74 = vector.extract_strided_slice %72 {offsets = [0, 32], sizes = [1, 32], strides = [1, 1]} : vector<1x128xf32> to vector<1x32xf32>
    %75 = vector.extract_strided_slice %68 {offsets = [0, 64], sizes = [1, 32], strides = [1, 1]} : vector<1x128xf32> to vector<1x32xf32>
    %76 = vector.extract_strided_slice %72 {offsets = [0, 96], sizes = [1, 32], strides = [1, 1]} : vector<1x128xf32> to vector<1x32xf32>
    %77 = arith.mulf %74, %62 : vector<1x32xf32>
    %78 = arith.mulf %73, %75 : vector<1x32xf32>
    %79 = arith.addf %77, %78 : vector<1x32xf32>
    %80 = math.tanh %79 : vector<1x32xf32>
    %81 = arith.mulf %76, %80 : vector<1x32xf32>
    %82 = vector.extract_strided_slice %13 {offsets = [4, 0], sizes = [1, 128], strides = [1, 1]} : vector<8x128xf32> to vector<1x128xf32>
    %cst_24 = arith.constant dense<0.000000e+00> : vector<1x128xf32>
    %83 = tpu.matmul %81, %7, %cst_24 {dimension_numbers = #tpu.dot_dimension_numbers<[1], [0], [0], [1], [0, 0, 1, 1], [], []>} : vector<1x32xf32>, vector<32x128xf32>, vector<1x128xf32> -> vector<1x128xf32>
    %84 = arith.addf %82, %83 : vector<1x128xf32>
    %85 = math.tanh %84 : vector<1x128xf32>
    %cst_25 = arith.constant 5.000000e-01 : f32
    %86 = vector.broadcast %cst_25 : f32 to vector<1x128xf32>
    %87 = arith.mulf %86, %85 : vector<1x128xf32>
    %cst_26 = arith.constant 5.000000e-01 : f32
    %88 = vector.broadcast %cst_26 : f32 to vector<1x128xf32>
    %89 = arith.addf %88, %87 : vector<1x128xf32>
    %90 = vector.extract_strided_slice %89 {offsets = [0, 0], sizes = [1, 32], strides = [1, 1]} : vector<1x128xf32> to vector<1x32xf32>
    %91 = vector.extract_strided_slice %89 {offsets = [0, 32], sizes = [1, 32], strides = [1, 1]} : vector<1x128xf32> to vector<1x32xf32>
    %92 = vector.extract_strided_slice %85 {offsets = [0, 64], sizes = [1, 32], strides = [1, 1]} : vector<1x128xf32> to vector<1x32xf32>
    %93 = vector.extract_strided_slice %89 {offsets = [0, 96], sizes = [1, 32], strides = [1, 1]} : vector<1x128xf32> to vector<1x32xf32>
    %94 = arith.mulf %91, %79 : vector<1x32xf32>
    %95 = arith.mulf %90, %92 : vector<1x32xf32>
    %96 = arith.addf %94, %95 : vector<1x32xf32>
    %97 = math.tanh %96 : vector<1x32xf32>
    %98 = arith.mulf %93, %97 : vector<1x32xf32>
    %99 = vector.extract_strided_slice %13 {offsets = [5, 0], sizes = [1, 128], strides = [1, 1]} : vector<8x128xf32> to vector<1x128xf32>
    %cst_27 = arith.constant dense<0.000000e+00> : vector<1x128xf32>
    %100 = tpu.matmul %98, %7, %cst_27 {dimension_numbers = #tpu.dot_dimension_numbers<[1], [0], [0], [1], [0, 0, 1, 1], [], []>} : vector<1x32xf32>, vector<32x128xf32>, vector<1x128xf32> -> vector<1x128xf32>
    %101 = arith.addf %99, %100 : vector<1x128xf32>
    %102 = math.tanh %101 : vector<1x128xf32>
    %cst_28 = arith.constant 5.000000e-01 : f32
    %103 = vector.broadcast %cst_28 : f32 to vector<1x128xf32>
    %104 = arith.mulf %103, %102 : vector<1x128xf32>
    %cst_29 = arith.constant 5.000000e-01 : f32
    %105 = vector.broadcast %cst_29 : f32 to vector<1x128xf32>
    %106 = arith.addf %105, %104 : vector<1x128xf32>
    %107 = vector.extract_strided_slice %106 {offsets = [0, 0], sizes = [1, 32], strides = [1, 1]} : vector<1x128xf32> to vector<1x32xf32>
    %108 = vector.extract_strided_slice %106 {offsets = [0, 32], sizes = [1, 32], strides = [1, 1]} : vector<1x128xf32> to vector<1x32xf32>
    %109 = vector.extract_strided_slice %102 {offsets = [0, 64], sizes = [1, 32], strides = [1, 1]} : vector<1x128xf32> to vector<1x32xf32>
    %110 = vector.extract_strided_slice %106 {offsets = [0, 96], sizes = [1, 32], strides = [1, 1]} : vector<1x128xf32> to vector<1x32xf32>
    %111 = arith.mulf %108, %96 : vector<1x32xf32>
    %112 = arith.mulf %107, %109 : vector<1x32xf32>
    %113 = arith.addf %111, %112 : vector<1x32xf32>
    %114 = math.tanh %113 : vector<1x32xf32>
    %115 = arith.mulf %110, %114 : vector<1x32xf32>
    %116 = vector.extract_strided_slice %13 {offsets = [6, 0], sizes = [1, 128], strides = [1, 1]} : vector<8x128xf32> to vector<1x128xf32>
    %cst_30 = arith.constant dense<0.000000e+00> : vector<1x128xf32>
    %117 = tpu.matmul %115, %7, %cst_30 {dimension_numbers = #tpu.dot_dimension_numbers<[1], [0], [0], [1], [0, 0, 1, 1], [], []>} : vector<1x32xf32>, vector<32x128xf32>, vector<1x128xf32> -> vector<1x128xf32>
    %118 = arith.addf %116, %117 : vector<1x128xf32>
    %119 = math.tanh %118 : vector<1x128xf32>
    %cst_31 = arith.constant 5.000000e-01 : f32
    %120 = vector.broadcast %cst_31 : f32 to vector<1x128xf32>
    %121 = arith.mulf %120, %119 : vector<1x128xf32>
    %cst_32 = arith.constant 5.000000e-01 : f32
    %122 = vector.broadcast %cst_32 : f32 to vector<1x128xf32>
    %123 = arith.addf %122, %121 : vector<1x128xf32>
    %124 = vector.extract_strided_slice %123 {offsets = [0, 0], sizes = [1, 32], strides = [1, 1]} : vector<1x128xf32> to vector<1x32xf32>
    %125 = vector.extract_strided_slice %123 {offsets = [0, 32], sizes = [1, 32], strides = [1, 1]} : vector<1x128xf32> to vector<1x32xf32>
    %126 = vector.extract_strided_slice %119 {offsets = [0, 64], sizes = [1, 32], strides = [1, 1]} : vector<1x128xf32> to vector<1x32xf32>
    %127 = vector.extract_strided_slice %123 {offsets = [0, 96], sizes = [1, 32], strides = [1, 1]} : vector<1x128xf32> to vector<1x32xf32>
    %128 = arith.mulf %125, %113 : vector<1x32xf32>
    %129 = arith.mulf %124, %126 : vector<1x32xf32>
    %130 = arith.addf %128, %129 : vector<1x32xf32>
    %131 = math.tanh %130 : vector<1x32xf32>
    %132 = arith.mulf %127, %131 : vector<1x32xf32>
    %133 = vector.extract_strided_slice %13 {offsets = [7, 0], sizes = [1, 128], strides = [1, 1]} : vector<8x128xf32> to vector<1x128xf32>
    %cst_33 = arith.constant dense<0.000000e+00> : vector<1x128xf32>
    %134 = tpu.matmul %132, %7, %cst_33 {dimension_numbers = #tpu.dot_dimension_numbers<[1], [0], [0], [1], [0, 0, 1, 1], [], []>} : vector<1x32xf32>, vector<32x128xf32>, vector<1x128xf32> -> vector<1x128xf32>
    %135 = arith.addf %133, %134 : vector<1x128xf32>
    %136 = math.tanh %135 : vector<1x128xf32>
    %cst_34 = arith.constant 5.000000e-01 : f32
    %137 = vector.broadcast %cst_34 : f32 to vector<1x128xf32>
    %138 = arith.mulf %137, %136 : vector<1x128xf32>
    %cst_35 = arith.constant 5.000000e-01 : f32
    %139 = vector.broadcast %cst_35 : f32 to vector<1x128xf32>
    %140 = arith.addf %139, %138 : vector<1x128xf32>
    %141 = vector.extract_strided_slice %140 {offsets = [0, 0], sizes = [1, 32], strides = [1, 1]} : vector<1x128xf32> to vector<1x32xf32>
    %142 = vector.extract_strided_slice %140 {offsets = [0, 32], sizes = [1, 32], strides = [1, 1]} : vector<1x128xf32> to vector<1x32xf32>
    %143 = vector.extract_strided_slice %136 {offsets = [0, 64], sizes = [1, 32], strides = [1, 1]} : vector<1x128xf32> to vector<1x32xf32>
    %144 = vector.extract_strided_slice %140 {offsets = [0, 96], sizes = [1, 32], strides = [1, 1]} : vector<1x128xf32> to vector<1x32xf32>
    %145 = arith.mulf %142, %130 : vector<1x32xf32>
    %146 = arith.mulf %141, %143 : vector<1x32xf32>
    %147 = arith.addf %145, %146 : vector<1x32xf32>
    %148 = math.tanh %147 : vector<1x32xf32>
    %149 = arith.mulf %144, %148 : vector<1x32xf32>
    %150 = tpu.concatenate %30, %47, %64, %81, %98, %115, %132, %149 in 0 : vector<1x32xf32>, vector<1x32xf32>, vector<1x32xf32>, vector<1x32xf32>, vector<1x32xf32>, vector<1x32xf32>, vector<1x32xf32>, vector<1x32xf32> -> vector<8x32xf32>
    %151 = arith.index_cast %11 : i32 to index
    %c0_36 = arith.constant 0 : index
    %152 = vector.load %arg8[%151, %c0_36] : memref<16x32xf32, #tpu.memory_space<vmem>>, vector<8x32xf32>
    tpu.vector_store %arg8[%151, %c0_36], %150 {strides = array<i32>} : memref<16x32xf32, #tpu.memory_space<vmem>>, vector<8x32xf32>,
    %c1_i32 = arith.constant 1 : i32
    %c8_i32_37 = arith.constant 8 : i32
    %153 = arith.muli %c1_i32, %c8_i32_37 : i32
    %154 = tpu.assume_multiple %153, 8 : i32
    %155 = arith.index_cast %154 : i32 to index
    %c0_38 = arith.constant 0 : index
    %156 = vector.load %arg7[%155, %c0_38] : memref<16x128xf32, #tpu.memory_space<vmem>>, vector<8x128xf32>
    %157 = vector.extract_strided_slice %156 {offsets = [0, 0], sizes = [1, 128], strides = [1, 1]} : vector<8x128xf32> to vector<1x128xf32>
    %cst_39 = arith.constant dense<0.000000e+00> : vector<1x128xf32>
    %158 = tpu.matmul %149, %7, %cst_39 {dimension_numbers = #tpu.dot_dimension_numbers<[1], [0], [0], [1], [0, 0, 1, 1], [], []>} : vector<1x32xf32>, vector<32x128xf32>, vector<1x128xf32> -> vector<1x128xf32>
    %159 = arith.addf %157, %158 : vector<1x128xf32>
    %160 = math.tanh %159 : vector<1x128xf32>
    %cst_40 = arith.constant 5.000000e-01 : f32
    %161 = vector.broadcast %cst_40 : f32 to vector<1x128xf32>
    %162 = arith.mulf %161, %160 : vector<1x128xf32>
    %cst_41 = arith.constant 5.000000e-01 : f32
    %163 = vector.broadcast %cst_41 : f32 to vector<1x128xf32>
    %164 = arith.addf %163, %162 : vector<1x128xf32>
    %165 = vector.extract_strided_slice %164 {offsets = [0, 0], sizes = [1, 32], strides = [1, 1]} : vector<1x128xf32> to vector<1x32xf32>
    %166 = vector.extract_strided_slice %164 {offsets = [0, 32], sizes = [1, 32], strides = [1, 1]} : vector<1x128xf32> to vector<1x32xf32>
    %167 = vector.extract_strided_slice %160 {offsets = [0, 64], sizes = [1, 32], strides = [1, 1]} : vector<1x128xf32> to vector<1x32xf32>
    %168 = vector.extract_strided_slice %164 {offsets = [0, 96], sizes = [1, 32], strides = [1, 1]} : vector<1x128xf32> to vector<1x32xf32>
    %169 = arith.mulf %166, %147 : vector<1x32xf32>
    %170 = arith.mulf %165, %167 : vector<1x32xf32>
    %171 = arith.addf %169, %170 : vector<1x32xf32>
    %172 = math.tanh %171 : vector<1x32xf32>
    %173 = arith.mulf %168, %172 : vector<1x32xf32>
    %174 = vector.extract_strided_slice %156 {offsets = [1, 0], sizes = [1, 128], strides = [1, 1]} : vector<8x128xf32> to vector<1x128xf32>
    %cst_42 = arith.constant dense<0.000000e+00> : vector<1x128xf32>
    %175 = tpu.matmul %173, %7, %cst_42 {dimension_numbers = #tpu.dot_dimension_numbers<[1], [0], [0], [1], [0, 0, 1, 1], [], []>} : vector<1x32xf32>, vector<32x128xf32>, vector<1x128xf32> -> vector<1x128xf32>
    %176 = arith.addf %174, %175 : vector<1x128xf32>
    %177 = math.tanh %176 : vector<1x128xf32>
    %cst_43 = arith.constant 5.000000e-01 : f32
    %178 = vector.broadcast %cst_43 : f32 to vector<1x128xf32>
    %179 = arith.mulf %178, %177 : vector<1x128xf32>
    %cst_44 = arith.constant 5.000000e-01 : f32
    %180 = vector.broadcast %cst_44 : f32 to vector<1x128xf32>
    %181 = arith.addf %180, %179 : vector<1x128xf32>
    %182 = vector.extract_strided_slice %181 {offsets = [0, 0], sizes = [1, 32], strides = [1, 1]} : vector<1x128xf32> to vector<1x32xf32>
    %183 = vector.extract_strided_slice %181 {offsets = [0, 32], sizes = [1, 32], strides = [1, 1]} : vector<1x128xf32> to vector<1x32xf32>
    %184 = vector.extract_strided_slice %177 {offsets = [0, 64], sizes = [1, 32], strides = [1, 1]} : vector<1x128xf32> to vector<1x32xf32>
    %185 = vector.extract_strided_slice %181 {offsets = [0, 96], sizes = [1, 32], strides = [1, 1]} : vector<1x128xf32> to vector<1x32xf32>
    %186 = arith.mulf %183, %171 : vector<1x32xf32>
    %187 = arith.mulf %182, %184 : vector<1x32xf32>
    %188 = arith.addf %186, %187 : vector<1x32xf32>
    %189 = math.tanh %188 : vector<1x32xf32>
    %190 = arith.mulf %185, %189 : vector<1x32xf32>
    %191 = vector.extract_strided_slice %156 {offsets = [2, 0], sizes = [1, 128], strides = [1, 1]} : vector<8x128xf32> to vector<1x128xf32>
    %cst_45 = arith.constant dense<0.000000e+00> : vector<1x128xf32>
    %192 = tpu.matmul %190, %7, %cst_45 {dimension_numbers = #tpu.dot_dimension_numbers<[1], [0], [0], [1], [0, 0, 1, 1], [], []>} : vector<1x32xf32>, vector<32x128xf32>, vector<1x128xf32> -> vector<1x128xf32>
    %193 = arith.addf %191, %192 : vector<1x128xf32>
    %194 = math.tanh %193 : vector<1x128xf32>
    %cst_46 = arith.constant 5.000000e-01 : f32
    %195 = vector.broadcast %cst_46 : f32 to vector<1x128xf32>
    %196 = arith.mulf %195, %194 : vector<1x128xf32>
    %cst_47 = arith.constant 5.000000e-01 : f32
    %197 = vector.broadcast %cst_47 : f32 to vector<1x128xf32>
    %198 = arith.addf %197, %196 : vector<1x128xf32>
    %199 = vector.extract_strided_slice %198 {offsets = [0, 0], sizes = [1, 32], strides = [1, 1]} : vector<1x128xf32> to vector<1x32xf32>
    %200 = vector.extract_strided_slice %198 {offsets = [0, 32], sizes = [1, 32], strides = [1, 1]} : vector<1x128xf32> to vector<1x32xf32>
    %201 = vector.extract_strided_slice %194 {offsets = [0, 64], sizes = [1, 32], strides = [1, 1]} : vector<1x128xf32> to vector<1x32xf32>
    %202 = vector.extract_strided_slice %198 {offsets = [0, 96], sizes = [1, 32], strides = [1, 1]} : vector<1x128xf32> to vector<1x32xf32>
    %203 = arith.mulf %200, %188 : vector<1x32xf32>
    %204 = arith.mulf %199, %201 : vector<1x32xf32>
    %205 = arith.addf %203, %204 : vector<1x32xf32>
    %206 = math.tanh %205 : vector<1x32xf32>
    %207 = arith.mulf %202, %206 : vector<1x32xf32>
    %208 = vector.extract_strided_slice %156 {offsets = [3, 0], sizes = [1, 128], strides = [1, 1]} : vector<8x128xf32> to vector<1x128xf32>
    %cst_48 = arith.constant dense<0.000000e+00> : vector<1x128xf32>
    %209 = tpu.matmul %207, %7, %cst_48 {dimension_numbers = #tpu.dot_dimension_numbers<[1], [0], [0], [1], [0, 0, 1, 1], [], []>} : vector<1x32xf32>, vector<32x128xf32>, vector<1x128xf32> -> vector<1x128xf32>
    %210 = arith.addf %208, %209 : vector<1x128xf32>
    %211 = math.tanh %210 : vector<1x128xf32>
    %cst_49 = arith.constant 5.000000e-01 : f32
    %212 = vector.broadcast %cst_49 : f32 to vector<1x128xf32>
    %213 = arith.mulf %212, %211 : vector<1x128xf32>
    %cst_50 = arith.constant 5.000000e-01 : f32
    %214 = vector.broadcast %cst_50 : f32 to vector<1x128xf32>
    %215 = arith.addf %214, %213 : vector<1x128xf32>
    %216 = vector.extract_strided_slice %215 {offsets = [0, 0], sizes = [1, 32], strides = [1, 1]} : vector<1x128xf32> to vector<1x32xf32>
    %217 = vector.extract_strided_slice %215 {offsets = [0, 32], sizes = [1, 32], strides = [1, 1]} : vector<1x128xf32> to vector<1x32xf32>
    %218 = vector.extract_strided_slice %211 {offsets = [0, 64], sizes = [1, 32], strides = [1, 1]} : vector<1x128xf32> to vector<1x32xf32>
    %219 = vector.extract_strided_slice %215 {offsets = [0, 96], sizes = [1, 32], strides = [1, 1]} : vector<1x128xf32> to vector<1x32xf32>
    %220 = arith.mulf %217, %205 : vector<1x32xf32>
    %221 = arith.mulf %216, %218 : vector<1x32xf32>
    %222 = arith.addf %220, %221 : vector<1x32xf32>
    %223 = math.tanh %222 : vector<1x32xf32>
    %224 = arith.mulf %219, %223 : vector<1x32xf32>
    %225 = vector.extract_strided_slice %156 {offsets = [4, 0], sizes = [1, 128], strides = [1, 1]} : vector<8x128xf32> to vector<1x128xf32>
    %cst_51 = arith.constant dense<0.000000e+00> : vector<1x128xf32>
    %226 = tpu.matmul %224, %7, %cst_51 {dimension_numbers = #tpu.dot_dimension_numbers<[1], [0], [0], [1], [0, 0, 1, 1], [], []>} : vector<1x32xf32>, vector<32x128xf32>, vector<1x128xf32> -> vector<1x128xf32>
    %227 = arith.addf %225, %226 : vector<1x128xf32>
    %228 = math.tanh %227 : vector<1x128xf32>
    %cst_52 = arith.constant 5.000000e-01 : f32
    %229 = vector.broadcast %cst_52 : f32 to vector<1x128xf32>
    %230 = arith.mulf %229, %228 : vector<1x128xf32>
    %cst_53 = arith.constant 5.000000e-01 : f32
    %231 = vector.broadcast %cst_53 : f32 to vector<1x128xf32>
    %232 = arith.addf %231, %230 : vector<1x128xf32>
    %233 = vector.extract_strided_slice %232 {offsets = [0, 0], sizes = [1, 32], strides = [1, 1]} : vector<1x128xf32> to vector<1x32xf32>
    %234 = vector.extract_strided_slice %232 {offsets = [0, 32], sizes = [1, 32], strides = [1, 1]} : vector<1x128xf32> to vector<1x32xf32>
    %235 = vector.extract_strided_slice %228 {offsets = [0, 64], sizes = [1, 32], strides = [1, 1]} : vector<1x128xf32> to vector<1x32xf32>
    %236 = vector.extract_strided_slice %232 {offsets = [0, 96], sizes = [1, 32], strides = [1, 1]} : vector<1x128xf32> to vector<1x32xf32>
    %237 = arith.mulf %234, %222 : vector<1x32xf32>
    %238 = arith.mulf %233, %235 : vector<1x32xf32>
    %239 = arith.addf %237, %238 : vector<1x32xf32>
    %240 = math.tanh %239 : vector<1x32xf32>
    %241 = arith.mulf %236, %240 : vector<1x32xf32>
    %242 = vector.extract_strided_slice %156 {offsets = [5, 0], sizes = [1, 128], strides = [1, 1]} : vector<8x128xf32> to vector<1x128xf32>
    %cst_54 = arith.constant dense<0.000000e+00> : vector<1x128xf32>
    %243 = tpu.matmul %241, %7, %cst_54 {dimension_numbers = #tpu.dot_dimension_numbers<[1], [0], [0], [1], [0, 0, 1, 1], [], []>} : vector<1x32xf32>, vector<32x128xf32>, vector<1x128xf32> -> vector<1x128xf32>
    %244 = arith.addf %242, %243 : vector<1x128xf32>
    %245 = math.tanh %244 : vector<1x128xf32>
    %cst_55 = arith.constant 5.000000e-01 : f32
    %246 = vector.broadcast %cst_55 : f32 to vector<1x128xf32>
    %247 = arith.mulf %246, %245 : vector<1x128xf32>
    %cst_56 = arith.constant 5.000000e-01 : f32
    %248 = vector.broadcast %cst_56 : f32 to vector<1x128xf32>
    %249 = arith.addf %248, %247 : vector<1x128xf32>
    %250 = vector.extract_strided_slice %249 {offsets = [0, 0], sizes = [1, 32], strides = [1, 1]} : vector<1x128xf32> to vector<1x32xf32>
    %251 = vector.extract_strided_slice %249 {offsets = [0, 32], sizes = [1, 32], strides = [1, 1]} : vector<1x128xf32> to vector<1x32xf32>
    %252 = vector.extract_strided_slice %245 {offsets = [0, 64], sizes = [1, 32], strides = [1, 1]} : vector<1x128xf32> to vector<1x32xf32>
    %253 = vector.extract_strided_slice %249 {offsets = [0, 96], sizes = [1, 32], strides = [1, 1]} : vector<1x128xf32> to vector<1x32xf32>
    %254 = arith.mulf %251, %239 : vector<1x32xf32>
    %255 = arith.mulf %250, %252 : vector<1x32xf32>
    %256 = arith.addf %254, %255 : vector<1x32xf32>
    %257 = math.tanh %256 : vector<1x32xf32>
    %258 = arith.mulf %253, %257 : vector<1x32xf32>
    %259 = vector.extract_strided_slice %156 {offsets = [6, 0], sizes = [1, 128], strides = [1, 1]} : vector<8x128xf32> to vector<1x128xf32>
    %cst_57 = arith.constant dense<0.000000e+00> : vector<1x128xf32>
    %260 = tpu.matmul %258, %7, %cst_57 {dimension_numbers = #tpu.dot_dimension_numbers<[1], [0], [0], [1], [0, 0, 1, 1], [], []>} : vector<1x32xf32>, vector<32x128xf32>, vector<1x128xf32> -> vector<1x128xf32>
    %261 = arith.addf %259, %260 : vector<1x128xf32>
    %262 = math.tanh %261 : vector<1x128xf32>
    %cst_58 = arith.constant 5.000000e-01 : f32
    %263 = vector.broadcast %cst_58 : f32 to vector<1x128xf32>
    %264 = arith.mulf %263, %262 : vector<1x128xf32>
    %cst_59 = arith.constant 5.000000e-01 : f32
    %265 = vector.broadcast %cst_59 : f32 to vector<1x128xf32>
    %266 = arith.addf %265, %264 : vector<1x128xf32>
    %267 = vector.extract_strided_slice %266 {offsets = [0, 0], sizes = [1, 32], strides = [1, 1]} : vector<1x128xf32> to vector<1x32xf32>
    %268 = vector.extract_strided_slice %266 {offsets = [0, 32], sizes = [1, 32], strides = [1, 1]} : vector<1x128xf32> to vector<1x32xf32>
    %269 = vector.extract_strided_slice %262 {offsets = [0, 64], sizes = [1, 32], strides = [1, 1]} : vector<1x128xf32> to vector<1x32xf32>
    %270 = vector.extract_strided_slice %266 {offsets = [0, 96], sizes = [1, 32], strides = [1, 1]} : vector<1x128xf32> to vector<1x32xf32>
    %271 = arith.mulf %268, %256 : vector<1x32xf32>
    %272 = arith.mulf %267, %269 : vector<1x32xf32>
    %273 = arith.addf %271, %272 : vector<1x32xf32>
    %274 = math.tanh %273 : vector<1x32xf32>
    %275 = arith.mulf %270, %274 : vector<1x32xf32>
    %276 = vector.extract_strided_slice %156 {offsets = [7, 0], sizes = [1, 128], strides = [1, 1]} : vector<8x128xf32> to vector<1x128xf32>
    %cst_60 = arith.constant dense<0.000000e+00> : vector<1x128xf32>
    %277 = tpu.matmul %275, %7, %cst_60 {dimension_numbers = #tpu.dot_dimension_numbers<[1], [0], [0], [1], [0, 0, 1, 1], [], []>} : vector<1x32xf32>, vector<32x128xf32>, vector<1x128xf32> -> vector<1x128xf32>
    %278 = arith.addf %276, %277 : vector<1x128xf32>
    %279 = math.tanh %278 : vector<1x128xf32>
    %cst_61 = arith.constant 5.000000e-01 : f32
    %280 = vector.broadcast %cst_61 : f32 to vector<1x128xf32>
    %281 = arith.mulf %280, %279 : vector<1x128xf32>
    %cst_62 = arith.constant 5.000000e-01 : f32
    %282 = vector.broadcast %cst_62 : f32 to vector<1x128xf32>
    %283 = arith.addf %282, %281 : vector<1x128xf32>
    %284 = vector.extract_strided_slice %283 {offsets = [0, 0], sizes = [1, 32], strides = [1, 1]} : vector<1x128xf32> to vector<1x32xf32>
    %285 = vector.extract_strided_slice %283 {offsets = [0, 32], sizes = [1, 32], strides = [1, 1]} : vector<1x128xf32> to vector<1x32xf32>
    %286 = vector.extract_strided_slice %279 {offsets = [0, 64], sizes = [1, 32], strides = [1, 1]} : vector<1x128xf32> to vector<1x32xf32>
    %287 = vector.extract_strided_slice %283 {offsets = [0, 96], sizes = [1, 32], strides = [1, 1]} : vector<1x128xf32> to vector<1x32xf32>
    %288 = arith.mulf %285, %273 : vector<1x32xf32>
    %289 = arith.mulf %284, %286 : vector<1x32xf32>
    %290 = arith.addf %288, %289 : vector<1x32xf32>
    %291 = math.tanh %290 : vector<1x32xf32>
    %292 = arith.mulf %287, %291 : vector<1x32xf32>
    %293 = tpu.concatenate %173, %190, %207, %224, %241, %258, %275, %292 in 0 : vector<1x32xf32>, vector<1x32xf32>, vector<1x32xf32>, vector<1x32xf32>, vector<1x32xf32>, vector<1x32xf32>, vector<1x32xf32>, vector<1x32xf32> -> vector<8x32xf32>
    %294 = arith.index_cast %154 : i32 to index
    %c0_63 = arith.constant 0 : index
    %295 = vector.load %arg8[%294, %c0_63] : memref<16x32xf32, #tpu.memory_space<vmem>>, vector<8x32xf32>
    tpu.vector_store %arg8[%294, %c0_63], %293 {strides = array<i32>} : memref<16x32xf32, #tpu.memory_space<vmem>>, vector<8x32xf32>,
    %c2_i32 = arith.constant 2 : i32
    %c0_64 = arith.constant 0 : index
    %c0_65 = arith.constant 0 : index
    %296 = vector.load %arg8[%c0_64, %c0_65] : memref<16x32xf32, #tpu.memory_space<vmem>>, vector<16x32xf32>
    %297 = arith.truncf %296 : vector<16x32xf32> to vector<16x32xbf16>
    %c0_66 = arith.constant 0 : index
    %c0_67 = arith.constant 0 : index
    %298 = vector.load %arg4[%c0_66, %c0_67] : memref<32x8xbf16, #tpu.memory_space<vmem>>, vector<32x8xbf16>
    %cst_68 = arith.constant dense<0.000000e+00> : vector<16x8xf32>
    %299 = tpu.matmul %297, %298, %cst_68 {dimension_numbers = #tpu.dot_dimension_numbers<[1], [0], [0], [1], [0, 0, 1, 1], [], []>} : vector<16x32xbf16>, vector<32x8xbf16>, vector<16x8xf32> -> vector<16x8xf32>
    %c0_69 = arith.constant 0 : index
    %c0_70 = arith.constant 0 : index
    %300 = vector.load %arg5[%c0_69, %c0_70] : memref<1x8xf32, #tpu.memory_space<vmem>>, vector<1x8xf32>
    %301 = vector.broadcast %300 : vector<1x8xf32> to vector<16x8xf32>
    %302 = arith.addf %299, %301 : vector<16x8xf32>
    %cst_71 = arith.constant dense<0xFF800000> : vector<16xf32>
    %303 = vector.multi_reduction <maximumf>, %302, %cst_71 [1] : vector<16x8xf32> to vector<16xf32>
    %304 = vector.shape_cast %303 : vector<16xf32> to vector<16x1xf32>
    %305 = vector.broadcast %304 : vector<16x1xf32> to vector<16x8xf32>
    %306 = arith.subf %302, %305 : vector<16x8xf32>
    %307 = math.exp %306 : vector<16x8xf32>
    %cst_72 = arith.constant dense<0.000000e+00> : vector<16xf32>
    %308 = vector.multi_reduction <add>, %307, %cst_72 [1] : vector<16x8xf32> to vector<16xf32>
    %309 = vector.shape_cast %308 : vector<16xf32> to vector<16x1xf32>
    %310 = math.log %309 : vector<16x1xf32>
    %311 = vector.broadcast %310 : vector<16x1xf32> to vector<16x8xf32>
    %312 = arith.subf %306, %311 : vector<16x8xf32>
    %c0_73 = arith.constant 0 : index
    %c0_74 = arith.constant 0 : index
    %313 = vector.load %arg6[%c0_73, %c0_74] : memref<16x8xf32, #tpu.memory_space<vmem>>, vector<16x8xf32>
    tpu.vector_store %arg6[%c0_73, %c0_74], %312 {strides = array<i32>} : memref<16x8xf32, #tpu.memory_space<vmem>>, vector<16x8xf32>,
    return
  }
}

</mosaic_0001>

<llo_original>
// kernel: tpu_custom_call.1
$region0: #{tpu_custom_call.1}
  #allocation0 [shape = 'u32[]', space=smem, size = 0x4, offset = 0x4, fixed_abs, tag = 'smem constant byte address 0x4 - core index']
  #allocation1 [shape = 'u32[144,128]{1,0:T(1,128)}', space=vmem, size = 0x12000, scoped, tag = 'internal scratch']
  #allocation2 [shape = 'f32[16,128]{1,0:T(8,128)}', space=vmem, size = 0x2000, scoped, tag = 'scratch operand']
  #allocation3 [shape = 'f32[16,32]{1,0:T(8,128)}', space=vmem, size = 0x2000, scoped, tag = 'scratch operand']
  %s0 = inlined_call_operand.hbm [shape: bf16[16,32], index: 0, kind: input, shape index: {}]
  %s1 = inlined_call_operand.vmem [shape: bf16[32,128], index: 1, kind: input, shape index: {}]
  %s2 = inlined_call_operand.hbm [shape: f32[32,128], index: 2, kind: input, shape index: {}]
  %s3 = inlined_call_operand.vmem [shape: f32[1,128], index: 3, kind: input, shape index: {}]
  %s4 = inlined_call_operand.vmem [shape: bf16[32,8], index: 4, kind: input, shape index: {}]
  %s5 = inlined_call_operand.vmem [shape: f32[1,8], index: 5, kind: input, shape index: {}]
  %s6 = inlined_call_operand.vmem [shape: f32[16,8], index: 6, kind: output, shape index: {}]
  %s7 = sld [smem:[#allocation0]]
  $region42: #{tpu_custom_call.1} parent=0
    _
  %s9 = ssub.s32 1, %s7
  %s10 = scalar_select 0, %s9, %s7
  $region1: #{tpu_custom_call.1} parent=0
    #allocation4 [shape = 'u8[4096]{0}', space=vmem, size = 0x1000, scoped, tag = 'input window, operand 0, single buffered']
    #allocation5 [shape = 's32[1]{0}', space=sflag, size = 0x4, scoped, tag = 'scoped memory for tpu_custom_call.1']
    #allocation6 [shape = 'u8[16384]{0}', space=vmem, size = 0x4000, scoped, tag = 'input window, operand 2, single buffered']
    #allocation7 [shape = 's32[1]{0}', space=sflag, size = 0x4, scoped, tag = 'scoped memory for tpu_custom_call.1']
    %11 = vsyncpa [#allocation5], 0
    %12 = vsyncpa [#allocation7], 0
    // Predicated region
    $region2: #{tpu_custom_call.1} parent=1 // pred_check
      _
    $region3: #{tpu_custom_call.1} parent=1 // pred_check_branch
      %14 = sbr.rel (0) target = $region5
    $region4: #{tpu_custom_call.1} parent=1 // pred_region
      %s16 = ssub.s32 128, 128
      %17 = vsyncadd [#allocation5], %s16
      %s18 = sshll.u32 [#allocation4], 4
      %s19 = int_to_ptr.vmem [resolvable:$true] %s18
      %24 = dma.hbm_to_vmem [thread:$0]  %s0, 128, %s19, [#allocation5], 64, 64, 4
    $region5: #{tpu_custom_call.1} parent=1 // pred_fallthru
      _
    // Predicated region
    $region6: #{tpu_custom_call.1} parent=1 // pred_check
      _
    $region7: #{tpu_custom_call.1} parent=1 // pred_check_branch
      %26 = sbr.rel (0) target = $region9
    $region8: #{tpu_custom_call.1} parent=1 // pred_region
      _
    $region9: #{tpu_custom_call.1} parent=1 // pred_fallthru
      _
    // Predicated region
    $region10: #{tpu_custom_call.1} parent=1 // pred_check
      _
    $region11: #{tpu_custom_call.1} parent=1 // pred_check_branch
      %28 = sbr.rel (0) target = $region13
    $region12: #{tpu_custom_call.1} parent=1 // pred_region
      %s30 = ssub.s32 512, 512
      %31 = vsyncadd [#allocation7], %s30
      %s32 = sshll.u32 [#allocation6], 4
      %s33 = int_to_ptr.vmem [resolvable:$true] %s32
      %38 = dma.hbm_to_vmem [thread:$0]  %s2, 512, %s33, [#allocation7], 128, 128, 8
    $region13: #{tpu_custom_call.1} parent=1 // pred_fallthru
      _
    // Predicated region
    $region14: #{tpu_custom_call.1} parent=1 // pred_check
      _
    $region15: #{tpu_custom_call.1} parent=1 // pred_check_branch
      %40 = sbr.rel (0) target = $region17
    $region16: #{tpu_custom_call.1} parent=1 // pred_region
      _
    $region17: #{tpu_custom_call.1} parent=1 // pred_fallthru
      _
    // Predicated region
    $region18: #{tpu_custom_call.1} parent=1 // pred_check
      _
    $region19: #{tpu_custom_call.1} parent=1 // pred_check_branch
      %42 = sbr.rel (0) target = $region21
    $region20: #{tpu_custom_call.1} parent=1 // pred_region
      _
    $region21: #{tpu_custom_call.1} parent=1 // pred_fallthru
      _
    // Predicated region
    $region22: #{tpu_custom_call.1} parent=1 // pred_check
      _
    $region23: #{tpu_custom_call.1} parent=1 // pred_check_branch
      %44 = sbr.rel (0) target = $region25
    $region24: #{tpu_custom_call.1} parent=1 // pred_region
      _
    $region25: #{tpu_custom_call.1} parent=1 // pred_fallthru
      _
    // Predicated region
    $region26: #{tpu_custom_call.1} parent=1 // pred_check
      _
    $region27: #{tpu_custom_call.1} parent=1 // pred_check_branch
      %46 = sbr.rel (0) target = $region29
    $region28: #{tpu_custom_call.1} parent=1 // pred_region
      %47 = dma.done [#allocation5], 128
    $region29: #{tpu_custom_call.1} parent=1 // pred_fallthru
      _
    // Predicated region
    $region30: #{tpu_custom_call.1} parent=1 // pred_check
      _
    $region31: #{tpu_custom_call.1} parent=1 // pred_check_branch
      %49 = sbr.rel (0) target = $region33
    $region32: #{tpu_custom_call.1} parent=1 // pred_region
      %50 = dma.done [#allocation7], 512
    $region33: #{tpu_custom_call.1} parent=1 // pred_fallthru
      _
    %v52 = vld [vmem:[#allocation4] sm:$0xf]
    %v53 = vld [vmem:[#allocation4 + $0x4] sm:$0xf]
    %v54 = vld [vmem:[%s1] sm:$0xf]
    %v55 = vld [vmem:[%s1 + $0x4] sm:$0xf]
    %v56 = vld [vmem:[%s1 + $0x8] sm:$0xf]
    %v57 = vld [vmem:[%s1 + $0xc] sm:$0xf]
    %v58 = vld [vmem:[%s3] sm:$0x1]
    %v60 = vlaneseq
    %v61 = vshrl.u32 %v60, 7
    %v62 = vsub.s32 0, %v61
    %v63 = vrot.slane %v58, %v62
    %v67 = vunpack.c.l.b16 %v52
    %v68 = vunpack.c.l.b16 %v53
    %v69 = vpack.c.b16 %v68, %v67
    %v74 = vunpack.c.l.b16 %v54
    %v75 = vunpack.c.l.b16 %v55
    %v76 = vunpack.c.l.b16 %v56
    %v77 = vunpack.c.l.b16 %v57
    %v78 = vpack.c.b16 %v75, %v74
    %v79 = vpack.c.b16 %v77, %v76
    %vm82 = vcmask 261120
    %v84 = vsel %vm82, %v69, 0
    %86 = vmatprep.subr.bf16.mxu0 0
    %87 = vmatpush1.bf16.msra.mxu0 %v78
    %88 = vmatprep.subr.bf16.mxu0 0
    %89 = vmatpush1.bf16.msra.mxu0 %v79
    %90 = vmatprep.subr.bf16.mxu0 0
    %91 = vmatpush1.bf16.msra.mxu0 0
    %92 = vmatprep.subr.bf16.mxu0 0
    %93 = vmatpush1.bf16.msra.mxu0 0
    %94 = vmatprep.subr.bf16.mxu0 0
    %95 = vmatpush1.bf16.msra.mxu0 0
    %96 = vmatprep.subr.bf16.mxu0 0
    %97 = vmatpush1.bf16.msra.mxu0 0
    %98 = vmatprep.subr.bf16.mxu0 0
    %99 = vmatpush1.bf16.msra.mxu0 0
    %100 = vmatprep.subr.bf16.mxu0 0
    %101 = vmatpush1.bf16.msra.mxu0 0
    %102 = vmatprep.subr.bf16.mxu0 0
    %103 = vmatpush1.bf16.msra.mxu0 0
    %104 = vmatprep.subr.bf16.mxu0 0
    %105 = vmatpush1.bf16.msra.mxu0 0
    %106 = vmatprep.subr.bf16.mxu0 0
    %107 = vmatpush1.bf16.msra.mxu0 0
    %108 = vmatprep.subr.bf16.mxu0 0
    %109 = vmatpush1.bf16.msra.mxu0 0
    %110 = vmatprep.subr.bf16.mxu0 0
    %111 = vmatpush1.bf16.msra.mxu0 0
    %112 = vmatprep.subr.bf16.mxu0 0
    %113 = vmatpush1.bf16.msra.mxu0 0
    %114 = vmatprep.subr.bf16.mxu0 0
    %115 = vmatpush1.bf16.msra.mxu0 0
    %116 = vmatprep.subr.bf16.mxu0 0
    %117 = vmatpush1.bf16.msra.mxu0 0
    %118 = vmatprep.mubr.bf16.mxu0 0
    %119 = vmatmul.mubr.bf16.gmra.mrb[0].mxu0 %v84
    %v120 = vpop.f32.mrb[0].mxu0
    %v121 = vadd.f32 %v63, %v120
    %v122 = vpop.f32.mrb[0].mxu0
    %v123 = vpop.f32.mrb[0].mxu0
    %v124 = vadd.f32 %v63, %v123
    %v125 = vpop.f32.mrb[0].mxu0
    %126 = vdwg.mxu0
    %127 = vst [vmem:[#allocation2] sm:$0xff] %v121
    %128 = vst [vmem:[#allocation2 + $0x8] sm:$0xff] %v124
    %v129 = vld [vmem:[#allocation6] sm:$0xff]
    %v130 = vld [vmem:[#allocation6 + $0x8] sm:$0xff]
    %v131 = vld [vmem:[#allocation6 + $0x10] sm:$0xff]
    %v132 = vld [vmem:[#allocation6 + $0x18] sm:$0xff]
    %v133 = vld [vmem:[#allocation2] sm:$0xff]
    %v135 = vsel %vm82, 0.0, 0
    %137 = vmatprep.subr.mxu0 0.0
    %138 = vmatpush1.msra.mxu0 %v129
    %139 = vmatprep.subr.mxu0 0.0
    %140 = vmatpush1.msra.mxu0 %v130
    %141 = vmatprep.subr.mxu0 0.0
    %142 = vmatpush1.msra.mxu0 %v131
    %143 = vmatprep.subr.mxu0 0.0
    %144 = vmatpush1.msra.mxu0 %v132
    %145 = vmatprep.subr.mxu0 0.0
    %146 = vmatpush1.msra.mxu0 0.0
    %147 = vmatprep.subr.mxu0 0.0
    %148 = vmatpush1.msra.mxu0 0.0
    %149 = vmatprep.subr.mxu0 0.0
    %150 = vmatpush1.msra.mxu0 0.0
    %151 = vmatprep.subr.mxu0 0.0
    %152 = vmatpush1.msra.mxu0 0.0
    %153 = vmatprep.subr.mxu0 0.0
    %154 = vmatpush1.msra.mxu0 0.0
    %155 = vmatprep.subr.mxu0 0.0
    %156 = vmatpush1.msra.mxu0 0.0
    %157 = vmatprep.subr.mxu0 0.0
    %158 = vmatpush1.msra.mxu0 0.0
    %159 = vmatprep.subr.mxu0 0.0
    %160 = vmatpush1.msra.mxu0 0.0
    %161 = vmatprep.subr.mxu0 0.0
    %162 = vmatpush1.msra.mxu0 0.0
    %163 = vmatprep.subr.mxu0 0.0
    %164 = vmatpush1.msra.mxu0 0.0
    %165 = vmatprep.subr.mxu0 0.0
    %166 = vmatpush1.msra.mxu0 0.0
    %167 = vmatprep.subr.mxu0 0.0
    %168 = vmatpush1.msra.mxu0 0.0
    %169 = vmatprep.subr.mxu0 0.0
    %170 = vmatpush1.msra.mxu0 0.0
    %171 = vmatprep.subr.mxu0 0.0
    %172 = vmatpush1.msra.mxu0 0.0
    %173 = vmatprep.subr.mxu0 0.0
    %174 = vmatpush1.msra.mxu0 0.0
    %175 = vmatprep.subr.mxu0 0.0
    %176 = vmatpush1.msra.mxu0 0.0
    %177 = vmatprep.subr.mxu0 0.0
    %178 = vmatpush1.msra.mxu0 0.0
    %179 = vmatprep.subr.mxu0 0.0
    %180 = vmatpush1.msra.mxu0 0.0
    %181 = vmatprep.subr.mxu0 0.0
    %182 = vmatpush1.msra.mxu0 0.0
    %183 = vmatprep.subr.mxu0 0.0
    %184 = vmatpush1.msra.mxu0 0.0
    %185 = vmatprep.subr.mxu0 0.0
    %186 = vmatpush1.msra.mxu0 0.0
    %187 = vmatprep.subr.mxu0 0.0
    %188 = vmatpush1.msra.mxu0 0.0
    %189 = vmatprep.subr.mxu0 0.0
    %190 = vmatpush1.msra.mxu0 0.0
    %191 = vmatprep.subr.mxu0 0.0
    %192 = vmatpush1.msra.mxu0 0.0
    %193 = vmatprep.subr.mxu0 0.0
    %194 = vmatpush1.msra.mxu0 0.0
    %195 = vmatprep.subr.mxu0 0.0
    %196 = vmatpush1.msra.mxu0 0.0
    %197 = vmatprep.subr.mxu0 0.0
    %198 = vmatpush1.msra.mxu0 0.0
    %199 = vmatprep.subr.mxu0 0.0
    %200 = vmatpush1.msra.mxu0 0.0
    %201 = vmatprep.mubr.f32.mxu0 0.0
    %202 = vmatmul.mubr.f32.gmra.mrb[0].mxu0 %v135
    %v203 = vpop.f32.mrb[0].mxu0
    %v204 = vadd.f32 0.0, %v203
    %v205 = vpop.f32.mrb[0].mxu0
    %206 = vdwg.mxu0
    %v207 = vadd.f32 %v133, %v204
    %v208 = vtanh.pop %v207
    %v209 = vmul.f32 %v208, 0.5
    %v210 = vadd.f32 %v209, 0.5
    %v211 = vmul.f32 %v210, 0.0
    %213 = vrot.lane.b32.xlu0 %v208, 64
    %v214 = vpop.permute.xlu0 %213
    %v216 = vmul.f32 %v210, %v214
    %218 = vrot.lane.b32.xlu0 %v216, 32
    %v219 = vpop.permute.xlu0 %218
    %v221 = vadd.f32 %v211, %v219
    %v222 = vtanh.pop %v221
    %224 = vrot.lane.b32.xlu0 %v222, 64
    %v225 = vpop.permute.xlu0 %224
    %v227 = vmul.f32 %v210, %v225
    %229 = vrot.lane.b32.xlu0 %v227, 32
    %v230 = vpop.permute.xlu0 %229
    %v231 = vsel %vm82, %v230, 0
    %233 = vmatprep.subr.mxu0 0.0
    %234 = vmatpush1.msra.mxu0 %v129
    %235 = vmatprep.subr.mxu0 0.0
    %236 = vmatpush1.msra.mxu0 %v130
    %237 = vmatprep.subr.mxu0 0.0
    %238 = vmatpush1.msra.mxu0 %v131
    %239 = vmatprep.subr.mxu0 0.0
    %240 = vmatpush1.msra.mxu0 %v132
    %241 = vmatprep.subr.mxu0 0.0
    %242 = vmatpush1.msra.mxu0 0.0
    %243 = vmatprep.subr.mxu0 0.0
    %244 = vmatpush1.msra.mxu0 0.0
    %245 = vmatprep.subr.mxu0 0.0
    %246 = vmatpush1.msra.mxu0 0.0
    %247 = vmatprep.subr.mxu0 0.0
    %248 = vmatpush1.msra.mxu0 0.0
    %249 = vmatprep.subr.mxu0 0.0
    %250 = vmatpush1.msra.mxu0 0.0
    %251 = vmatprep.subr.mxu0 0.0
    %252 = vmatpush1.msra.mxu0 0.0
    %253 = vmatprep.subr.mxu0 0.0
    %254 = vmatpush1.msra.mxu0 0.0
    %255 = vmatprep.subr.mxu0 0.0
    %256 = vmatpush1.msra.mxu0 0.0
    %257 = vmatprep.subr.mxu0 0.0
    %258 = vmatpush1.msra.mxu0 0.0
    %259 = vmatprep.subr.mxu0 0.0
    %260 = vmatpush1.msra.mxu0 0.0
    %261 = vmatprep.subr.mxu0 0.0
    %262 = vmatpush1.msra.mxu0 0.0
    %263 = vmatprep.subr.mxu0 0.0
    %264 = vmatpush1.msra.mxu0 0.0
    %265 = vmatprep.subr.mxu0 0.0
    %266 = vmatpush1.msra.mxu0 0.0
    %267 = vmatprep.subr.mxu0 0.0
    %268 = vmatpush1.msra.mxu0 0.0
    %269 = vmatprep.subr.mxu0 0.0
    %270 = vmatpush1.msra.mxu0 0.0
    %271 = vmatprep.subr.mxu0 0.0
    %272 = vmatpush1.msra.mxu0 0.0
    %273 = vmatprep.subr.mxu0 0.0
    %274 = vmatpush1.msra.mxu0 0.0
    %275 = vmatprep.subr.mxu0 0.0
    %276 = vmatpush1.msra.mxu0 0.0
    %277 = vmatprep.subr.mxu0 0.0
    %278 = vmatpush1.msra.mxu0 0.0
    %279 = vmatprep.subr.mxu0 0.0
    %280 = vmatpush1.msra.mxu0 0.0
    %281 = vmatprep.subr.mxu0 0.0
    %282 = vmatpush1.msra.mxu0 0.0
    %283 = vmatprep.subr.mxu0 0.0
    %284 = vmatpush1.msra.mxu0 0.0
    %285 = vmatprep.subr.mxu0 0.0
    %286 = vmatpush1.msra.mxu0 0.0
    %287 = vmatprep.subr.mxu0 0.0
    %288 = vmatpush1.msra.mxu0 0.0
    %289 = vmatprep.subr.mxu0 0.0
    %290 = vmatpush1.msra.mxu0 0.0
    %291 = vmatprep.subr.mxu0 0.0
    %292 = vmatpush1.msra.mxu0 0.0
    %293 = vmatprep.subr.mxu0 0.0
    %294 = vmatpush1.msra.mxu0 0.0
    %295 = vmatprep.subr.mxu0 0.0
    %296 = vmatpush1.msra.mxu0 0.0
    %297 = vmatprep.mubr.f32.mxu0 0.0
    %298 = vmatmul.mubr.f32.gmra.mrb[0].mxu0 %v231
    %v299 = vpop.f32.mrb[0].mxu0
    %v300 = vadd.f32 0.0, %v299
    %v301 = vpop.f32.mrb[0].mxu0
    %302 = vdwg.mxu0
    %v304 = vrot.slane %v300, 7
    %v306 = vadd.f32 %v133, %v304
    %v307 = vtanh.pop %v306
    %v308 = vmul.f32 %v307, 0.5
    %v309 = vadd.f32 %v308, 0.5
    %v311 = vrot.slane %v221, 7
    %v313 = vmul.f32 %v309, %v311
    %315 = vrot.lane.b32.xlu0 %v307, 64
    %v316 = vpop.permute.xlu0 %315
    %v318 = vmul.f32 %v309, %v316
    %320 = vrot.lane.b32.xlu0 %v318, 32
    %v321 = vpop.permute.xlu0 %320
    %v323 = vadd.f32 %v313, %v321
    %v324 = vtanh.pop %v323
    %326 = vrot.lane.b32.xlu0 %v324, 64
    %v327 = vpop.permute.xlu0 %326
    %v329 = vmul.f32 %v309, %v327
    %v331 = vrot.slane %v329, 1
    %332 = vrot.lane.b32.xlu0 %v331, 32
    %v333 = vpop.permute.xlu0 %332
    %v334 = vsel %vm82, %v333, 0
    %336 = vmatprep.subr.mxu0 0.0
    %337 = vmatpush1.msra.mxu0 %v129
    %338 = vmatprep.subr.mxu0 0.0
    %339 = vmatpush1.msra.mxu0 %v130
    %340 = vmatprep.subr.mxu0 0.0
    %341 = vmatpush1.msra.mxu0 %v131
    %342 = vmatprep.subr.mxu0 0.0
    %343 = vmatpush1.msra.mxu0 %v132
    %344 = vmatprep.subr.mxu0 0.0
    %345 = vmatpush1.msra.mxu0 0.0
    %346 = vmatprep.subr.mxu0 0.0
    %347 = vmatpush1.msra.mxu0 0.0
    %348 = vmatprep.subr.mxu0 0.0
    %349 = vmatpush1.msra.mxu0 0.0
    %350 = vmatprep.subr.mxu0 0.0
    %351 = vmatpush1.msra.mxu0 0.0
    %352 = vmatprep.subr.mxu0 0.0
    %353 = vmatpush1.msra.mxu0 0.0
    %354 = vmatprep.subr.mxu0 0.0
    %355 = vmatpush1.msra.mxu0 0.0
    %356 = vmatprep.subr.mxu0 0.0
    %357 = vmatpush1.msra.mxu0 0.0
    %358 = vmatprep.subr.mxu0 0.0
    %359 = vmatpush1.msra.mxu0 0.0
    %360 = vmatprep.subr.mxu0 0.0
    %361 = vmatpush1.msra.mxu0 0.0
    %362 = vmatprep.subr.mxu0 0.0
    %363 = vmatpush1.msra.mxu0 0.0
    %364 = vmatprep.subr.mxu0 0.0
    %365 = vmatpush1.msra.mxu0 0.0
    %366 = vmatprep.subr.mxu0 0.0
    %367 = vmatpush1.msra.mxu0 0.0
    %368 = vmatprep.subr.mxu0 0.0
    %369 = vmatpush1.msra.mxu0 0.0
    %370 = vmatprep.subr.mxu0 0.0
    %371 = vmatpush1.msra.mxu0 0.0
    %372 = vmatprep.subr.mxu0 0.0
    %373 = vmatpush1.msra.mxu0 0.0
    %374 = vmatprep.subr.mxu0 0.0
    %375 = vmatpush1.msra.mxu0 0.0
    %376 = vmatprep.subr.mxu0 0.0
    %377 = vmatpush1.msra.mxu0 0.0
    %378 = vmatprep.subr.mxu0 0.0
    %379 = vmatpush1.msra.mxu0 0.0
    %380 = vmatprep.subr.mxu0 0.0
    %381 = vmatpush1.msra.mxu0 0.0
    %382 = vmatprep.subr.mxu0 0.0
    %383 = vmatpush1.msra.mxu0 0.0
    %384 = vmatprep.subr.mxu0 0.0
    %385 = vmatpush1.msra.mxu0 0.0
    %386 = vmatprep.subr.mxu0 0.0
    %387 = vmatpush1.msra.mxu0 0.0
    %388 = vmatprep.subr.mxu0 0.0
    %389 = vmatpush1.msra.mxu0 0.0
    %390 = vmatprep.subr.mxu0 0.0
    %391 = vmatpush1.msra.mxu0 0.0
    %392 = vmatprep.subr.mxu0 0.0
    %393 = vmatpush1.msra.mxu0 0.0
    %394 = vmatprep.subr.mxu0 0.0
    %395 = vmatpush1.msra.mxu0 0.0
    %396 = vmatprep.subr.mxu0 0.0
    %397 = vmatpush1.msra.mxu0 0.0
    %398 = vmatprep.subr.mxu0 0.0
    %399 = vmatpush1.msra.mxu0 0.0
    %400 = vmatprep.mubr.f32.mxu0 0.0
    %401 = vmatmul.mubr.f32.gmra.mrb[0].mxu0 %v334
    %v402 = vpop.f32.mrb[0].mxu0
    %v403 = vadd.f32 0.0, %v402
    %v404 = vpop.f32.mrb[0].mxu0
    %405 = vdwg.mxu0
    %v407 = vrot.slane %v403, 6
    %v409 = vadd.f32 %v133, %v407
    %v410 = vtanh.pop %v409
    %v411 = vmul.f32 %v410, 0.5
    %v412 = vadd.f32 %v411, 0.5
    %v414 = vrot.slane %v323, 7
    %v416 = vmul.f32 %v412, %v414
    %418 = vrot.lane.b32.xlu0 %v410, 64
    %v419 = vpop.permute.xlu0 %418
    %v421 = vmul.f32 %v412, %v419
    %423 = vrot.lane.b32.xlu0 %v421, 32
    %v424 = vpop.permute.xlu0 %423
    %v426 = vadd.f32 %v416, %v424
    %v427 = vtanh.pop %v426
    %429 = vrot.lane.b32.xlu0 %v427, 64
    %v430 = vpop.permute.xlu0 %429
    %v432 = vmul.f32 %v412, %v430
    %v434 = vrot.slane %v432, 2
    %435 = vrot.lane.b32.xlu0 %v434, 32
    %v436 = vpop.permute.xlu0 %435
    %v437 = vsel %vm82, %v436, 0
    %439 = vmatprep.subr.mxu0 0.0
    %440 = vmatpush1.msra.mxu0 %v129
    %441 = vmatprep.subr.mxu0 0.0
    %442 = vmatpush1.msra.mxu0 %v130
    %443 = vmatprep.subr.mxu0 0.0
    %444 = vmatpush1.msra.mxu0 %v131
    %445 = vmatprep.subr.mxu0 0.0
    %446 = vmatpush1.msra.mxu0 %v132
    %447 = vmatprep.subr.mxu0 0.0
    %448 = vmatpush1.msra.mxu0 0.0
    %449 = vmatprep.subr.mxu0 0.0
    %450 = vmatpush1.msra.mxu0 0.0
    %451 = vmatprep.subr.mxu0 0.0
    %452 = vmatpush1.msra.mxu0 0.0
    %453 = vmatprep.subr.mxu0 0.0
    %454 = vmatpush1.msra.mxu0 0.0
    %455 = vmatprep.subr.mxu0 0.0
    %456 = vmatpush1.msra.mxu0 0.0
    %457 = vmatprep.subr.mxu0 0.0
    %458 = vmatpush1.msra.mxu0 0.0
    %459 = vmatprep.subr.mxu0 0.0
    %460 = vmatpush1.msra.mxu0 0.0
    %461 = vmatprep.subr.mxu0 0.0
    %462 = vmatpush1.msra.mxu0 0.0
    %463 = vmatprep.subr.mxu0 0.0
    %464 = vmatpush1.msra.mxu0 0.0
    %465 = vmatprep.subr.mxu0 0.0
    %466 = vmatpush1.msra.mxu0 0.0
    %467 = vmatprep.subr.mxu0 0.0
    %468 = vmatpush1.msra.mxu0 0.0
    %469 = vmatprep.subr.mxu0 0.0
    %470 = vmatpush1.msra.mxu0 0.0
    %471 = vmatprep.subr.mxu0 0.0
    %472 = vmatpush1.msra.mxu0 0.0
    %473 = vmatprep.subr.mxu0 0.0
    %474 = vmatpush1.msra.mxu0 0.0
    %475 = vmatprep.subr.mxu0 0.0
    %476 = vmatpush1.msra.mxu0 0.0
    %477 = vmatprep.subr.mxu0 0.0
    %478 = vmatpush1.msra.mxu0 0.0
    %479 = vmatprep.subr.mxu0 0.0
    %480 = vmatpush1.msra.mxu0 0.0
    %481 = vmatprep.subr.mxu0 0.0
    %482 = vmatpush1.msra.mxu0 0.0
    %483 = vmatprep.subr.mxu0 0.0
    %484 = vmatpush1.msra.mxu0 0.0
    %485 = vmatprep.subr.mxu0 0.0
    %486 = vmatpush1.msra.mxu0 0.0
    %487 = vmatprep.subr.mxu0 0.0
    %488 = vmatpush1.msra.mxu0 0.0
    %489 = vmatprep.subr.mxu0 0.0
    %490 = vmatpush1.msra.mxu0 0.0
    %491 = vmatprep.subr.mxu0 0.0
    %492 = vmatpush1.msra.mxu0 0.0
    %493 = vmatprep.subr.mxu0 0.0
    %494 = vmatpush1.msra.mxu0 0.0
    %495 = vmatprep.subr.mxu0 0.0
    %496 = vmatpush1.msra.mxu0 0.0
    %497 = vmatprep.subr.mxu0 0.0
    %498 = vmatpush1.msra.mxu0 0.0
    %499 = vmatprep.subr.mxu0 0.0
    %500 = vmatpush1.msra.mxu0 0.0
    %501 = vmatprep.subr.mxu0 0.0
    %502 = vmatpush1.msra.mxu0 0.0
    %503 = vmatprep.mubr.f32.mxu0 0.0
    %504 = vmatmul.mubr.f32.gmra.mrb[0].mxu0 %v437
    %v505 = vpop.f32.mrb[0].mxu0
    %v506 = vadd.f32 0.0, %v505
    %v507 = vpop.f32.mrb[0].mxu0
    %508 = vdwg.mxu0
    %v510 = vrot.slane %v506, 5
    %v512 = vadd.f32 %v133, %v510
    %v513 = vtanh.pop %v512
    %v514 = vmul.f32 %v513, 0.5
    %v515 = vadd.f32 %v514, 0.5
    %v517 = vrot.slane %v426, 7
    %v519 = vmul.f32 %v515, %v517
    %521 = vrot.lane.b32.xlu0 %v513, 64
    %v522 = vpop.permute.xlu0 %521
    %v524 = vmul.f32 %v515, %v522
    %526 = vrot.lane.b32.xlu0 %v524, 32
    %v527 = vpop.permute.xlu0 %526
    %v529 = vadd.f32 %v519, %v527
    %v530 = vtanh.pop %v529
    %532 = vrot.lane.b32.xlu0 %v530, 64
    %v533 = vpop.permute.xlu0 %532
    %v535 = vmul.f32 %v515, %v533
    %v537 = vrot.slane %v535, 3
    %538 = vrot.lane.b32.xlu0 %v537, 32
    %v539 = vpop.permute.xlu0 %538
    %v540 = vsel %vm82, %v539, 0
    %542 = vmatprep.subr.mxu0 0.0
    %543 = vmatpush1.msra.mxu0 %v129
    %544 = vmatprep.subr.mxu0 0.0
    %545 = vmatpush1.msra.mxu0 %v130
    %546 = vmatprep.subr.mxu0 0.0
    %547 = vmatpush1.msra.mxu0 %v131
    %548 = vmatprep.subr.mxu0 0.0
    %549 = vmatpush1.msra.mxu0 %v132
    %550 = vmatprep.subr.mxu0 0.0
    %551 = vmatpush1.msra.mxu0 0.0
    %552 = vmatprep.subr.mxu0 0.0
    %553 = vmatpush1.msra.mxu0 0.0
    %554 = vmatprep.subr.mxu0 0.0
    %555 = vmatpush1.msra.mxu0 0.0
    %556 = vmatprep.subr.mxu0 0.0
    %557 = vmatpush1.msra.mxu0 0.0
    %558 = vmatprep.subr.mxu0 0.0
    %559 = vmatpush1.msra.mxu0 0.0
    %560 = vmatprep.subr.mxu0 0.0
    %561 = vmatpush1.msra.mxu0 0.0
    %562 = vmatprep.subr.mxu0 0.0
    %563 = vmatpush1.msra.mxu0 0.0
    %564 = vmatprep.subr.mxu0 0.0
    %565 = vmatpush1.msra.mxu0 0.0
    %566 = vmatprep.subr.mxu0 0.0
    %567 = vmatpush1.msra.mxu0 0.0
    %568 = vmatprep.subr.mxu0 0.0
    %569 = vmatpush1.msra.mxu0 0.0
    %570 = vmatprep.subr.mxu0 0.0
    %571 = vmatpush1.msra.mxu0 0.0
    %572 = vmatprep.subr.mxu0 0.0
    %573 = vmatpush1.msra.mxu0 0.0
    %574 = vmatprep.subr.mxu0 0.0
    %575 = vmatpush1.msra.mxu0 0.0
    %576 = vmatprep.subr.mxu0 0.0
    %577 = vmatpush1.msra.mxu0 0.0
    %578 = vmatprep.subr.mxu0 0.0
    %579 = vmatpush1.msra.mxu0 0.0
    %580 = vmatprep.subr.mxu0 0.0
    %581 = vmatpush1.msra.mxu0 0.0
    %582 = vmatprep.subr.mxu0 0.0
    %583 = vmatpush1.msra.mxu0 0.0
    %584 = vmatprep.subr.mxu0 0.0
    %585 = vmatpush1.msra.mxu0 0.0
    %586 = vmatprep.subr.mxu0 0.0
    %587 = vmatpush1.msra.mxu0 0.0
    %588 = vmatprep.subr.mxu0 0.0
    %589 = vmatpush1.msra.mxu0 0.0
    %590 = vmatprep.subr.mxu0 0.0
    %591 = vmatpush1.msra.mxu0 0.0
    %592 = vmatprep.subr.mxu0 0.0
    %593 = vmatpush1.msra.mxu0 0.0
    %594 = vmatprep.subr.mxu0 0.0
    %595 = vmatpush1.msra.mxu0 0.0
    %596 = vmatprep.subr.mxu0 0.0
    %597 = vmatpush1.msra.mxu0 0.0
    %598 = vmatprep.subr.mxu0 0.0
    %599 = vmatpush1.msra.mxu0 0.0
    %600 = vmatprep.subr.mxu0 0.0
    %601 = vmatpush1.msra.mxu0 0.0
    %602 = vmatprep.subr.mxu0 0.0
    %603 = vmatpush1.msra.mxu0 0.0
    %604 = vmatprep.subr.mxu0 0.0
    %605 = vmatpush1.msra.mxu0 0.0
    %606 = vmatprep.mubr.f32.mxu0 0.0
    %607 = vmatmul.mubr.f32.gmra.mrb[0].mxu0 %v540
    %v608 = vpop.f32.mrb[0].mxu0
    %v609 = vadd.f32 0.0, %v608
    %v610 = vpop.f32.mrb[0].mxu0
    %611 = vdwg.mxu0
    %v613 = vrot.slane %v609, 4
    %v615 = vadd.f32 %v133, %v613
    %v616 = vtanh.pop %v615
    %v617 = vmul.f32 %v616, 0.5
    %v618 = vadd.f32 %v617, 0.5
    %v620 = vrot.slane %v529, 7
    %v622 = vmul.f32 %v618, %v620
    %624 = vrot.lane.b32.xlu0 %v616, 64
    %v625 = vpop.permute.xlu0 %624
    %v627 = vmul.f32 %v618, %v625
    %629 = vrot.lane.b32.xlu0 %v627, 32
    %v630 = vpop.permute.xlu0 %629
    %v632 = vadd.f32 %v622, %v630
    %v633 = vtanh.pop %v632
    %635 = vrot.lane.b32.xlu0 %v633, 64
    %v636 = vpop.permute.xlu0 %635
    %v638 = vmul.f32 %v618, %v636
    %v640 = vrot.slane %v638, 4
    %641 = vrot.lane.b32.xlu0 %v640, 32
    %v642 = vpop.permute.xlu0 %641
    %v643 = vsel %vm82, %v642, 0
    %645 = vmatprep.subr.mxu0 0.0
    %646 = vmatpush1.msra.mxu0 %v129
    %647 = vmatprep.subr.mxu0 0.0
    %648 = vmatpush1.msra.mxu0 %v130
    %649 = vmatprep.subr.mxu0 0.0
    %650 = vmatpush1.msra.mxu0 %v131
    %651 = vmatprep.subr.mxu0 0.0
    %652 = vmatpush1.msra.mxu0 %v132
    %653 = vmatprep.subr.mxu0 0.0
    %654 = vmatpush1.msra.mxu0 0.0
    %655 = vmatprep.subr.mxu0 0.0
    %656 = vmatpush1.msra.mxu0 0.0
    %657 = vmatprep.subr.mxu0 0.0
    %658 = vmatpush1.msra.mxu0 0.0
    %659 = vmatprep.subr.mxu0 0.0
    %660 = vmatpush1.msra.mxu0 0.0
    %661 = vmatprep.subr.mxu0 0.0
    %662 = vmatpush1.msra.mxu0 0.0
    %663 = vmatprep.subr.mxu0 0.0
    %664 = vmatpush1.msra.mxu0 0.0
    %665 = vmatprep.subr.mxu0 0.0
    %666 = vmatpush1.msra.mxu0 0.0
    %667 = vmatprep.subr.mxu0 0.0
    %668 = vmatpush1.msra.mxu0 0.0
    %669 = vmatprep.subr.mxu0 0.0
    %670 = vmatpush1.msra.mxu0 0.0
    %671 = vmatprep.subr.mxu0 0.0
    %672 = vmatpush1.msra.mxu0 0.0
    %673 = vmatprep.subr.mxu0 0.0
    %674 = vmatpush1.msra.mxu0 0.0
    %675 = vmatprep.subr.mxu0 0.0
    %676 = vmatpush1.msra.mxu0 0.0
    %677 = vmatprep.subr.mxu0 0.0
    %678 = vmatpush1.msra.mxu0 0.0
    %679 = vmatprep.subr.mxu0 0.0
    %680 = vmatpush1.msra.mxu0 0.0
    %681 = vmatprep.subr.mxu0 0.0
    %682 = vmatpush1.msra.mxu0 0.0
    %683 = vmatprep.subr.mxu0 0.0
    %684 = vmatpush1.msra.mxu0 0.0
    %685 = vmatprep.subr.mxu0 0.0
    %686 = vmatpush1.msra.mxu0 0.0
    %687 = vmatprep.subr.mxu0 0.0
    %688 = vmatpush1.msra.mxu0 0.0
    %689 = vmatprep.subr.mxu0 0.0
    %690 = vmatpush1.msra.mxu0 0.0
    %691 = vmatprep.subr.mxu0 0.0
    %692 = vmatpush1.msra.mxu0 0.0
    %693 = vmatprep.subr.mxu0 0.0
    %694 = vmatpush1.msra.mxu0 0.0
    %695 = vmatprep.subr.mxu0 0.0
    %696 = vmatpush1.msra.mxu0 0.0
    %697 = vmatprep.subr.mxu0 0.0
    %698 = vmatpush1.msra.mxu0 0.0
    %699 = vmatprep.subr.mxu0 0.0
    %700 = vmatpush1.msra.mxu0 0.0
    %701 = vmatprep.subr.mxu0 0.0
    %702 = vmatpush1.msra.mxu0 0.0
    %703 = vmatprep.subr.mxu0 0.0
    %704 = vmatpush1.msra.mxu0 0.0
    %705 = vmatprep.subr.mxu0 0.0
    %706 = vmatpush1.msra.mxu0 0.0
    %707 = vmatprep.subr.mxu0 0.0
    %708 = vmatpush1.msra.mxu0 0.0
    %709 = vmatprep.mubr.f32.mxu0 0.0
    %710 = vmatmul.mubr.f32.gmra.mrb[0].mxu0 %v643
    %v711 = vpop.f32.mrb[0].mxu0
    %v712 = vadd.f32 0.0, %v711
    %v713 = vpop.f32.mrb[0].mxu0
    %714 = vdwg.mxu0
    %v716 = vrot.slane %v712, 3
    %v718 = vadd.f32 %v133, %v716
    %v719 = vtanh.pop %v718
    %v720 = vmul.f32 %v719, 0.5
    %v721 = vadd.f32 %v720, 0.5
    %v723 = vrot.slane %v632, 7
    %v725 = vmul.f32 %v721, %v723
    %727 = vrot.lane.b32.xlu0 %v719, 64
    %v728 = vpop.permute.xlu0 %727
    %v730 = vmul.f32 %v721, %v728
    %732 = vrot.lane.b32.xlu0 %v730, 32
    %v733 = vpop.permute.xlu0 %732
    %v735 = vadd.f32 %v725, %v733
    %v736 = vtanh.pop %v735
    %738 = vrot.lane.b32.xlu0 %v736, 64
    %v739 = vpop.permute.xlu0 %738
    %v741 = vmul.f32 %v721, %v739
    %v743 = vrot.slane %v741, 5
    %744 = vrot.lane.b32.xlu0 %v743, 32
    %v745 = vpop.permute.xlu0 %744
    %v746 = vsel %vm82, %v745, 0
    %748 = vmatprep.subr.mxu0 0.0
    %749 = vmatpush1.msra.mxu0 %v129
    %750 = vmatprep.subr.mxu0 0.0
    %751 = vmatpush1.msra.mxu0 %v130
    %752 = vmatprep.subr.mxu0 0.0
    %753 = vmatpush1.msra.mxu0 %v131
    %754 = vmatprep.subr.mxu0 0.0
    %755 = vmatpush1.msra.mxu0 %v132
    %756 = vmatprep.subr.mxu0 0.0
    %757 = vmatpush1.msra.mxu0 0.0
    %758 = vmatprep.subr.mxu0 0.0
    %759 = vmatpush1.msra.mxu0 0.0
    %760 = vmatprep.subr.mxu0 0.0
    %761 = vmatpush1.msra.mxu0 0.0
    %762 = vmatprep.subr.mxu0 0.0
    %763 = vmatpush1.msra.mxu0 0.0
    %764 = vmatprep.subr.mxu0 0.0
    %765 = vmatpush1.msra.mxu0 0.0
    %766 = vmatprep.subr.mxu0 0.0
    %767 = vmatpush1.msra.mxu0 0.0
    %768 = vmatprep.subr.mxu0 0.0
    %769 = vmatpush1.msra.mxu0 0.0
    %770 = vmatprep.subr.mxu0 0.0
    %771 = vmatpush1.msra.mxu0 0.0
    %772 = vmatprep.subr.mxu0 0.0
    %773 = vmatpush1.msra.mxu0 0.0
    %774 = vmatprep.subr.mxu0 0.0
    %775 = vmatpush1.msra.mxu0 0.0
    %776 = vmatprep.subr.mxu0 0.0
    %777 = vmatpush1.msra.mxu0 0.0
    %778 = vmatprep.subr.mxu0 0.0
    %779 = vmatpush1.msra.mxu0 0.0
    %780 = vmatprep.subr.mxu0 0.0
    %781 = vmatpush1.msra.mxu0 0.0
    %782 = vmatprep.subr.mxu0 0.0
    %783 = vmatpush1.msra.mxu0 0.0
    %784 = vmatprep.subr.mxu0 0.0
    %785 = vmatpush1.msra.mxu0 0.0
    %786 = vmatprep.subr.mxu0 0.0
    %787 = vmatpush1.msra.mxu0 0.0
    %788 = vmatprep.subr.mxu0 0.0
    %789 = vmatpush1.msra.mxu0 0.0
    %790 = vmatprep.subr.mxu0 0.0
    %791 = vmatpush1.msra.mxu0 0.0
    %792 = vmatprep.subr.mxu0 0.0
    %793 = vmatpush1.msra.mxu0 0.0
    %794 = vmatprep.subr.mxu0 0.0
    %795 = vmatpush1.msra.mxu0 0.0
    %796 = vmatprep.subr.mxu0 0.0
    %797 = vmatpush1.msra.mxu0 0.0
    %798 = vmatprep.subr.mxu0 0.0
    %799 = vmatpush1.msra.mxu0 0.0
    %800 = vmatprep.subr.mxu0 0.0
    %801 = vmatpush1.msra.mxu0 0.0
    %802 = vmatprep.subr.mxu0 0.0
    %803 = vmatpush1.msra.mxu0 0.0
    %804 = vmatprep.subr.mxu0 0.0
    %805 = vmatpush1.msra.mxu0 0.0
    %806 = vmatprep.subr.mxu0 0.0
    %807 = vmatpush1.msra.mxu0 0.0
    %808 = vmatprep.subr.mxu0 0.0
    %809 = vmatpush1.msra.mxu0 0.0
    %810 = vmatprep.subr.mxu0 0.0
    %811 = vmatpush1.msra.mxu0 0.0
    %812 = vmatprep.mubr.f32.mxu0 0.0
    %813 = vmatmul.mubr.f32.gmra.mrb[0].mxu0 %v746
    %v814 = vpop.f32.mrb[0].mxu0
    %v815 = vadd.f32 0.0, %v814
    %v816 = vpop.f32.mrb[0].mxu0
    %817 = vdwg.mxu0
    %v819 = vrot.slane %v815, 2
    %v821 = vadd.f32 %v133, %v819
    %v822 = vtanh.pop %v821
    %v823 = vmul.f32 %v822, 0.5
    %v824 = vadd.f32 %v823, 0.5
    %v826 = vrot.slane %v735, 7
    %v828 = vmul.f32 %v824, %v826
    %830 = vrot.lane.b32.xlu0 %v822, 64
    %v831 = vpop.permute.xlu0 %830
    %v833 = vmul.f32 %v824, %v831
    %835 = vrot.lane.b32.xlu0 %v833, 32
    %v836 = vpop.permute.xlu0 %835
    %v838 = vadd.f32 %v828, %v836
    %v839 = vtanh.pop %v838
    %841 = vrot.lane.b32.xlu0 %v839, 64
    %v842 = vpop.permute.xlu0 %841
    %v844 = vmul.f32 %v824, %v842
    %v846 = vrot.slane %v844, 6
    %847 = vrot.lane.b32.xlu0 %v846, 32
    %v848 = vpop.permute.xlu0 %847
    %v849 = vsel %vm82, %v848, 0
    %851 = vmatprep.subr.mxu0 0.0
    %852 = vmatpush1.msra.mxu0 %v129
    %853 = vmatprep.subr.mxu0 0.0
    %854 = vmatpush1.msra.mxu0 %v130
    %855 = vmatprep.subr.mxu0 0.0
    %856 = vmatpush1.msra.mxu0 %v131
    %857 = vmatprep.subr.mxu0 0.0
    %858 = vmatpush1.msra.mxu0 %v132
    %859 = vmatprep.subr.mxu0 0.0
    %860 = vmatpush1.msra.mxu0 0.0
    %861 = vmatprep.subr.mxu0 0.0
    %862 = vmatpush1.msra.mxu0 0.0
    %863 = vmatprep.subr.mxu0 0.0
    %864 = vmatpush1.msra.mxu0 0.0
    %865 = vmatprep.subr.mxu0 0.0
    %866 = vmatpush1.msra.mxu0 0.0
    %867 = vmatprep.subr.mxu0 0.0
    %868 = vmatpush1.msra.mxu0 0.0
    %869 = vmatprep.subr.mxu0 0.0
    %870 = vmatpush1.msra.mxu0 0.0
    %871 = vmatprep.subr.mxu0 0.0
    %872 = vmatpush1.msra.mxu0 0.0
    %873 = vmatprep.subr.mxu0 0.0
    %874 = vmatpush1.msra.mxu0 0.0
    %875 = vmatprep.subr.mxu0 0.0
    %876 = vmatpush1.msra.mxu0 0.0
    %877 = vmatprep.subr.mxu0 0.0
    %878 = vmatpush1.msra.mxu0 0.0
    %879 = vmatprep.subr.mxu0 0.0
    %880 = vmatpush1.msra.mxu0 0.0
    %881 = vmatprep.subr.mxu0 0.0
    %882 = vmatpush1.msra.mxu0 0.0
    %883 = vmatprep.subr.mxu0 0.0
    %884 = vmatpush1.msra.mxu0 0.0
    %885 = vmatprep.subr.mxu0 0.0
    %886 = vmatpush1.msra.mxu0 0.0
    %887 = vmatprep.subr.mxu0 0.0
    %888 = vmatpush1.msra.mxu0 0.0
    %889 = vmatprep.subr.mxu0 0.0
    %890 = vmatpush1.msra.mxu0 0.0
    %891 = vmatprep.subr.mxu0 0.0
    %892 = vmatpush1.msra.mxu0 0.0
    %893 = vmatprep.subr.mxu0 0.0
    %894 = vmatpush1.msra.mxu0 0.0
    %895 = vmatprep.subr.mxu0 0.0
    %896 = vmatpush1.msra.mxu0 0.0
    %897 = vmatprep.subr.mxu0 0.0
    %898 = vmatpush1.msra.mxu0 0.0
    %899 = vmatprep.subr.mxu0 0.0
    %900 = vmatpush1.msra.mxu0 0.0
    %901 = vmatprep.subr.mxu0 0.0
    %902 = vmatpush1.msra.mxu0 0.0
    %903 = vmatprep.subr.mxu0 0.0
    %904 = vmatpush1.msra.mxu0 0.0
    %905 = vmatprep.subr.mxu0 0.0
    %906 = vmatpush1.msra.mxu0 0.0
    %907 = vmatprep.subr.mxu0 0.0
    %908 = vmatpush1.msra.mxu0 0.0
    %909 = vmatprep.subr.mxu0 0.0
    %910 = vmatpush1.msra.mxu0 0.0
    %911 = vmatprep.subr.mxu0 0.0
    %912 = vmatpush1.msra.mxu0 0.0
    %913 = vmatprep.subr.mxu0 0.0
    %914 = vmatpush1.msra.mxu0 0.0
    %915 = vmatprep.mubr.f32.mxu0 0.0
    %916 = vmatmul.mubr.f32.gmra.mrb[0].mxu0 %v849
    %v917 = vpop.f32.mrb[0].mxu0
    %v918 = vadd.f32 0.0, %v917
    %v919 = vpop.f32.mrb[0].mxu0
    %920 = vdwg.mxu0
    %v922 = vrot.slane %v918, 1
    %v924 = vadd.f32 %v133, %v922
    %v925 = vtanh.pop %v924
    %v926 = vmul.f32 %v925, 0.5
    %v927 = vadd.f32 %v926, 0.5
    %v929 = vrot.slane %v838, 7
    %v931 = vmul.f32 %v927, %v929
    %933 = vrot.lane.b32.xlu0 %v925, 64
    %v934 = vpop.permute.xlu0 %933
    %v936 = vmul.f32 %v927, %v934
    %938 = vrot.lane.b32.xlu0 %v936, 32
    %v939 = vpop.permute.xlu0 %938
    %v941 = vadd.f32 %v931, %v939
    %v942 = vtanh.pop %v941
    %944 = vrot.lane.b32.xlu0 %v942, 64
    %v945 = vpop.permute.xlu0 %944
    %v947 = vmul.f32 %v927, %v945
    %vm948 = vcmask 1040384
    %v949 = vsel %vm948, %v227, %v329
    %vm950 = vcmask 1041408
    %v951 = vsel %vm950, %v949, %v432
    %vm952 = vcmask 1042432
    %v953 = vsel %vm952, %v951, %v535
    %vm954 = vcmask 1043456
    %v955 = vsel %vm954, %v953, %v638
    %vm956 = vcmask 1044480
    %v957 = vsel %vm956, %v955, %v741
    %vm958 = vcmask 1045504
    %v959 = vsel %vm958, %v957, %v844
    %vm960 = vcmask 1046528
    %v961 = vsel %vm960, %v959, %v947
    %963 = vrot.lane.b32.xlu0 %v961, 32
    %v964 = vpop.permute.xlu0 %963
    %966 = vst.msk [vmem:[#allocation3] sm:$0xff] %vm82, %v964
    %s967 = scalar_lea.vmem [#allocation2], 8
    %v968 = vld [vmem:[%s967] sm:$0xff]
    %v970 = vrot.slane %v947, 7
    %971 = vrot.lane.b32.xlu0 %v970, 32
    %v972 = vpop.permute.xlu0 %971
    %v973 = vsel %vm82, %v972, 0
    %975 = vmatprep.subr.mxu0 0.0
    %976 = vmatpush1.msra.mxu0 %v129
    %977 = vmatprep.subr.mxu0 0.0
    %978 = vmatpush1.msra.mxu0 %v130
    %979 = vmatprep.subr.mxu0 0.0
    %980 = vmatpush1.msra.mxu0 %v131
    %981 = vmatprep.subr.mxu0 0.0
    %982 = vmatpush1.msra.mxu0 %v132
    %983 = vmatprep.subr.mxu0 0.0
    %984 = vmatpush1.msra.mxu0 0.0
    %985 = vmatprep.subr.mxu0 0.0
    %986 = vmatpush1.msra.mxu0 0.0
    %987 = vmatprep.subr.mxu0 0.0
    %988 = vmatpush1.msra.mxu0 0.0
    %989 = vmatprep.subr.mxu0 0.0
    %990 = vmatpush1.msra.mxu0 0.0
    %991 = vmatprep.subr.mxu0 0.0
    %992 = vmatpush1.msra.mxu0 0.0
    %993 = vmatprep.subr.mxu0 0.0
    %994 = vmatpush1.msra.mxu0 0.0
    %995 = vmatprep.subr.mxu0 0.0
    %996 = vmatpush1.msra.mxu0 0.0
    %997 = vmatprep.subr.mxu0 0.0
    %998 = vmatpush1.msra.mxu0 0.0
    %999 = vmatprep.subr.mxu0 0.0
    %1000 = vmatpush1.msra.mxu0 0.0
    %1001 = vmatprep.subr.mxu0 0.0
    %1002 = vmatpush1.msra.mxu0 0.0
    %1003 = vmatprep.subr.mxu0 0.0
    %1004 = vmatpush1.msra.mxu0 0.0
    %1005 = vmatprep.subr.mxu0 0.0
    %1006 = vmatpush1.msra.mxu0 0.0
    %1007 = vmatprep.subr.mxu0 0.0
    %1008 = vmatpush1.msra.mxu0 0.0
    %1009 = vmatprep.subr.mxu0 0.0
    %1010 = vmatpush1.msra.mxu0 0.0
    %1011 = vmatprep.subr.mxu0 0.0
    %1012 = vmatpush1.msra.mxu0 0.0
    %1013 = vmatprep.subr.mxu0 0.0
    %1014 = vmatpush1.msra.mxu0 0.0
    %1015 = vmatprep.subr.mxu0 0.0
    %1016 = vmatpush1.msra.mxu0 0.0
    %1017 = vmatprep.subr.mxu0 0.0
    %1018 = vmatpush1.msra.mxu0 0.0
    %1019 = vmatprep.subr.mxu0 0.0
    %1020 = vmatpush1.msra.mxu0 0.0
    %1021 = vmatprep.subr.mxu0 0.0
    %1022 = vmatpush1.msra.mxu0 0.0
    %1023 = vmatprep.subr.mxu0 0.0
    %1024 = vmatpush1.msra.mxu0 0.0
    %1025 = vmatprep.subr.mxu0 0.0
    %1026 = vmatpush1.msra.mxu0 0.0
    %1027 = vmatprep.subr.mxu0 0.0
    %1028 = vmatpush1.msra.mxu0 0.0
    %1029 = vmatprep.subr.mxu0 0.0
    %1030 = vmatpush1.msra.mxu0 0.0
    %1031 = vmatprep.subr.mxu0 0.0
    %1032 = vmatpush1.msra.mxu0 0.0
    %1033 = vmatprep.subr.mxu0 0.0
    %1034 = vmatpush1.msra.mxu0 0.0
    %1035 = vmatprep.subr.mxu0 0.0
    %1036 = vmatpush1.msra.mxu0 0.0
    %1037 = vmatprep.subr.mxu0 0.0
    %1038 = vmatpush1.msra.mxu0 0.0
    %1039 = vmatprep.mubr.f32.mxu0 0.0
    %1040 = vmatmul.mubr.f32.gmra.mrb[0].mxu0 %v973
    %v1041 = vpop.f32.mrb[0].mxu0
    %v1042 = vadd.f32 0.0, %v1041
    %v1043 = vpop.f32.mrb[0].mxu0
    %1044 = vdwg.mxu0
    %v1045 = vadd.f32 %v968, %v1042
    %v1046 = vtanh.pop %v1045
    %v1047 = vmul.f32 %v1046, 0.5
    %v1048 = vadd.f32 %v1047, 0.5
    %v1050 = vrot.slane %v941, 7
    %v1052 = vmul.f32 %v1048, %v1050
    %1054 = vrot.lane.b32.xlu0 %v1046, 64
    %v1055 = vpop.permute.xlu0 %1054
    %v1057 = vmul.f32 %v1048, %v1055
    %1059 = vrot.lane.b32.xlu0 %v1057, 32
    %v1060 = vpop.permute.xlu0 %1059
    %v1062 = vadd.f32 %v1052, %v1060
    %v1063 = vtanh.pop %v1062
    %1065 = vrot.lane.b32.xlu0 %v1063, 64
    %v1066 = vpop.permute.xlu0 %1065
    %v1068 = vmul.f32 %v1048, %v1066
    %1070 = vrot.lane.b32.xlu0 %v1068, 32
    %v1071 = vpop.permute.xlu0 %1070
    %v1072 = vsel %vm82, %v1071, 0
    %1074 = vmatprep.subr.mxu0 0.0
    %1075 = vmatpush1.msra.mxu0 %v129
    %1076 = vmatprep.subr.mxu0 0.0
    %1077 = vmatpush1.msra.mxu0 %v130
    %1078 = vmatprep.subr.mxu0 0.0
    %1079 = vmatpush1.msra.mxu0 %v131
    %1080 = vmatprep.subr.mxu0 0.0
    %1081 = vmatpush1.msra.mxu0 %v132
    %1082 = vmatprep.subr.mxu0 0.0
    %1083 = vmatpush1.msra.mxu0 0.0
    %1084 = vmatprep.subr.mxu0 0.0
    %1085 = vmatpush1.msra.mxu0 0.0
    %1086 = vmatprep.subr.mxu0 0.0
    %1087 = vmatpush1.msra.mxu0 0.0
    %1088 = vmatprep.subr.mxu0 0.0
    %1089 = vmatpush1.msra.mxu0 0.0
    %1090 = vmatprep.subr.mxu0 0.0
    %1091 = vmatpush1.msra.mxu0 0.0
    %1092 = vmatprep.subr.mxu0 0.0
    %1093 = vmatpush1.msra.mxu0 0.0
    %1094 = vmatprep.subr.mxu0 0.0
    %1095 = vmatpush1.msra.mxu0 0.0
    %1096 = vmatprep.subr.mxu0 0.0
    %1097 = vmatpush1.msra.mxu0 0.0
    %1098 = vmatprep.subr.mxu0 0.0
    %1099 = vmatpush1.msra.mxu0 0.0
    %1100 = vmatprep.subr.mxu0 0.0
    %1101 = vmatpush1.msra.mxu0 0.0
    %1102 = vmatprep.subr.mxu0 0.0
    %1103 = vmatpush1.msra.mxu0 0.0
    %1104 = vmatprep.subr.mxu0 0.0
    %1105 = vmatpush1.msra.mxu0 0.0
    %1106 = vmatprep.subr.mxu0 0.0
    %1107 = vmatpush1.msra.mxu0 0.0
    %1108 = vmatprep.subr.mxu0 0.0
    %1109 = vmatpush1.msra.mxu0 0.0
    %1110 = vmatprep.subr.mxu0 0.0
    %1111 = vmatpush1.msra.mxu0 0.0
    %1112 = vmatprep.subr.mxu0 0.0
    %1113 = vmatpush1.msra.mxu0 0.0
    %1114 = vmatprep.subr.mxu0 0.0
    %1115 = vmatpush1.msra.mxu0 0.0
    %1116 = vmatprep.subr.mxu0 0.0
    %1117 = vmatpush1.msra.mxu0 0.0
    %1118 = vmatprep.subr.mxu0 0.0
    %1119 = vmatpush1.msra.mxu0 0.0
    %1120 = vmatprep.subr.mxu0 0.0
    %1121 = vmatpush1.msra.mxu0 0.0
    %1122 = vmatprep.subr.mxu0 0.0
    %1123 = vmatpush1.msra.mxu0 0.0
    %1124 = vmatprep.subr.mxu0 0.0
    %1125 = vmatpush1.msra.mxu0 0.0
    %1126 = vmatprep.subr.mxu0 0.0
    %1127 = vmatpush1.msra.mxu0 0.0
    %1128 = vmatprep.subr.mxu0 0.0
    %1129 = vmatpush1.msra.mxu0 0.0
    %1130 = vmatprep.subr.mxu0 0.0
    %1131 = vmatpush1.msra.mxu0 0.0
    %1132 = vmatprep.subr.mxu0 0.0
    %1133 = vmatpush1.msra.mxu0 0.0
    %1134 = vmatprep.subr.mxu0 0.0
    %1135 = vmatpush1.msra.mxu0 0.0
    %1136 = vmatprep.subr.mxu0 0.0
    %1137 = vmatpush1.msra.mxu0 0.0
    %1138 = vmatprep.mubr.f32.mxu0 0.0
    %1139 = vmatmul.mubr.f32.gmra.mrb[0].mxu0 %v1072
    %v1140 = vpop.f32.mrb[0].mxu0
    %v1141 = vadd.f32 0.0, %v1140
    %v1142 = vpop.f32.mrb[0].mxu0
    %1143 = vdwg.mxu0
    %v1145 = vrot.slane %v1141, 7
    %v1147 = vadd.f32 %v968, %v1145
    %v1148 = vtanh.pop %v1147
    %v1149 = vmul.f32 %v1148, 0.5
    %v1150 = vadd.f32 %v1149, 0.5
    %v1152 = vrot.slane %v1062, 7
    %v1154 = vmul.f32 %v1150, %v1152
    %1156 = vrot.lane.b32.xlu0 %v1148, 64
    %v1157 = vpop.permute.xlu0 %1156
    %v1159 = vmul.f32 %v1150, %v1157
    %1161 = vrot.lane.b32.xlu0 %v1159, 32
    %v1162 = vpop.permute.xlu0 %1161
    %v1164 = vadd.f32 %v1154, %v1162
    %v1165 = vtanh.pop %v1164
    %1167 = vrot.lane.b32.xlu0 %v1165, 64
    %v1168 = vpop.permute.xlu0 %1167
    %v1170 = vmul.f32 %v1150, %v1168
    %v1172 = vrot.slane %v1170, 1
    %1173 = vrot.lane.b32.xlu0 %v1172, 32
    %v1174 = vpop.permute.xlu0 %1173
    %v1175 = vsel %vm82, %v1174, 0
    %1177 = vmatprep.subr.mxu0 0.0
    %1178 = vmatpush1.msra.mxu0 %v129
    %1179 = vmatprep.subr.mxu0 0.0
    %1180 = vmatpush1.msra.mxu0 %v130
    %1181 = vmatprep.subr.mxu0 0.0
    %1182 = vmatpush1.msra.mxu0 %v131
    %1183 = vmatprep.subr.mxu0 0.0
    %1184 = vmatpush1.msra.mxu0 %v132
    %1185 = vmatprep.subr.mxu0 0.0
    %1186 = vmatpush1.msra.mxu0 0.0
    %1187 = vmatprep.subr.mxu0 0.0
    %1188 = vmatpush1.msra.mxu0 0.0
    %1189 = vmatprep.subr.mxu0 0.0
    %1190 = vmatpush1.msra.mxu0 0.0
    %1191 = vmatprep.subr.mxu0 0.0
    %1192 = vmatpush1.msra.mxu0 0.0
    %1193 = vmatprep.subr.mxu0 0.0
    %1194 = vmatpush1.msra.mxu0 0.0
    %1195 = vmatprep.subr.mxu0 0.0
    %1196 = vmatpush1.msra.mxu0 0.0
    %1197 = vmatprep.subr.mxu0 0.0
    %1198 = vmatpush1.msra.mxu0 0.0
    %1199 = vmatprep.subr.mxu0 0.0
    %1200 = vmatpush1.msra.mxu0 0.0
    %1201 = vmatprep.subr.mxu0 0.0
    %1202 = vmatpush1.msra.mxu0 0.0
    %1203 = vmatprep.subr.mxu0 0.0
    %1204 = vmatpush1.msra.mxu0 0.0
    %1205 = vmatprep.subr.mxu0 0.0
    %1206 = vmatpush1.msra.mxu0 0.0
    %1207 = vmatprep.subr.mxu0 0.0
    %1208 = vmatpush1.msra.mxu0 0.0
    %1209 = vmatprep.subr.mxu0 0.0
    %1210 = vmatpush1.msra.mxu0 0.0
    %1211 = vmatprep.subr.mxu0 0.0
    %1212 = vmatpush1.msra.mxu0 0.0
    %1213 = vmatprep.subr.mxu0 0.0
    %1214 = vmatpush1.msra.mxu0 0.0
    %1215 = vmatprep.subr.mxu0 0.0
    %1216 = vmatpush1.msra.mxu0 0.0
    %1217 = vmatprep.subr.mxu0 0.0
    %1218 = vmatpush1.msra.mxu0 0.0
    %1219 = vmatprep.subr.mxu0 0.0
    %1220 = vmatpush1.msra.mxu0 0.0
    %1221 = vmatprep.subr.mxu0 0.0
    %1222 = vmatpush1.msra.mxu0 0.0
    %1223 = vmatprep.subr.mxu0 0.0
    %1224 = vmatpush1.msra.mxu0 0.0
    %1225 = vmatprep.subr.mxu0 0.0
    %1226 = vmatpush1.msra.mxu0 0.0
    %1227 = vmatprep.subr.mxu0 0.0
    %1228 = vmatpush1.msra.mxu0 0.0
    %1229 = vmatprep.subr.mxu0 0.0
    %1230 = vmatpush1.msra.mxu0 0.0
    %1231 = vmatprep.subr.mxu0 0.0
    %1232 = vmatpush1.msra.mxu0 0.0
    %1233 = vmatprep.subr.mxu0 0.0
    %1234 = vmatpush1.msra.mxu0 0.0
    %1235 = vmatprep.subr.mxu0 0.0
    %1236 = vmatpush1.msra.mxu0 0.0
    %1237 = vmatprep.subr.mxu0 0.0
    %1238 = vmatpush1.msra.mxu0 0.0
    %1239 = vmatprep.subr.mxu0 0.0
    %1240 = vmatpush1.msra.mxu0 0.0
    %1241 = vmatprep.mubr.f32.mxu0 0.0
    %1242 = vmatmul.mubr.f32.gmra.mrb[0].mxu0 %v1175
    %v1243 = vpop.f32.mrb[0].mxu0
    %v1244 = vadd.f32 0.0, %v1243
    %v1245 = vpop.f32.mrb[0].mxu0
    %1246 = vdwg.mxu0
    %v1248 = vrot.slane %v1244, 6
    %v1250 = vadd.f32 %v968, %v1248
    %v1251 = vtanh.pop %v1250
    %v1252 = vmul.f32 %v1251, 0.5
    %v1253 = vadd.f32 %v1252, 0.5
    %v1255 = vrot.slane %v1164, 7
    %v1257 = vmul.f32 %v1253, %v1255
    %1259 = vrot.lane.b32.xlu0 %v1251, 64
    %v1260 = vpop.permute.xlu0 %1259
    %v1262 = vmul.f32 %v1253, %v1260
    %1264 = vrot.lane.b32.xlu0 %v1262, 32
    %v1265 = vpop.permute.xlu0 %1264
    %v1267 = vadd.f32 %v1257, %v1265
    %v1268 = vtanh.pop %v1267
    %1270 = vrot.lane.b32.xlu0 %v1268, 64
    %v1271 = vpop.permute.xlu0 %1270
    %v1273 = vmul.f32 %v1253, %v1271
    %v1275 = vrot.slane %v1273, 2
    %1276 = vrot.lane.b32.xlu0 %v1275, 32
    %v1277 = vpop.permute.xlu0 %1276
    %v1278 = vsel %vm82, %v1277, 0
    %1280 = vmatprep.subr.mxu0 0.0
    %1281 = vmatpush1.msra.mxu0 %v129
    %1282 = vmatprep.subr.mxu0 0.0
    %1283 = vmatpush1.msra.mxu0 %v130
    %1284 = vmatprep.subr.mxu0 0.0
    %1285 = vmatpush1.msra.mxu0 %v131
    %1286 = vmatprep.subr.mxu0 0.0
    %1287 = vmatpush1.msra.mxu0 %v132
    %1288 = vmatprep.subr.mxu0 0.0
    %1289 = vmatpush1.msra.mxu0 0.0
    %1290 = vmatprep.subr.mxu0 0.0
    %1291 = vmatpush1.msra.mxu0 0.0
    %1292 = vmatprep.subr.mxu0 0.0
    %1293 = vmatpush1.msra.mxu0 0.0
    %1294 = vmatprep.subr.mxu0 0.0
    %1295 = vmatpush1.msra.mxu0 0.0
    %1296 = vmatprep.subr.mxu0 0.0
    %1297 = vmatpush1.msra.mxu0 0.0
    %1298 = vmatprep.subr.mxu0 0.0
    %1299 = vmatpush1.msra.mxu0 0.0
    %1300 = vmatprep.subr.mxu0 0.0
    %1301 = vmatpush1.msra.mxu0 0.0
    %1302 = vmatprep.subr.mxu0 0.0
    %1303 = vmatpush1.msra.mxu0 0.0
    %1304 = vmatprep.subr.mxu0 0.0
    %1305 = vmatpush1.msra.mxu0 0.0
    %1306 = vmatprep.subr.mxu0 0.0
    %1307 = vmatpush1.msra.mxu0 0.0
    %1308 = vmatprep.subr.mxu0 0.0
    %1309 = vmatpush1.msra.mxu0 0.0
    %1310 = vmatprep.subr.mxu0 0.0
    %1311 = vmatpush1.msra.mxu0 0.0
    %1312 = vmatprep.subr.mxu0 0.0
    %1313 = vmatpush1.msra.mxu0 0.0
    %1314 = vmatprep.subr.mxu0 0.0
    %1315 = vmatpush1.msra.mxu0 0.0
    %1316 = vmatprep.subr.mxu0 0.0
    %1317 = vmatpush1.msra.mxu0 0.0
    %1318 = vmatprep.subr.mxu0 0.0
    %1319 = vmatpush1.msra.mxu0 0.0
    %1320 = vmatprep.subr.mxu0 0.0
    %1321 = vmatpush1.msra.mxu0 0.0
    %1322 = vmatprep.subr.mxu0 0.0
    %1323 = vmatpush1.msra.mxu0 0.0
    %1324 = vmatprep.subr.mxu0 0.0
    %1325 = vmatpush1.msra.mxu0 0.0
    %1326 = vmatprep.subr.mxu0 0.0
    %1327 = vmatpush1.msra.mxu0 0.0
    %1328 = vmatprep.subr.mxu0 0.0
    %1329 = vmatpush1.msra.mxu0 0.0
    %1330 = vmatprep.subr.mxu0 0.0
    %1331 = vmatpush1.msra.mxu0 0.0
    %1332 = vmatprep.subr.mxu0 0.0
    %1333 = vmatpush1.msra.mxu0 0.0
    %1334 = vmatprep.subr.mxu0 0.0
    %1335 = vmatpush1.msra.mxu0 0.0
    %1336 = vmatprep.subr.mxu0 0.0
    %1337 = vmatpush1.msra.mxu0 0.0
    %1338 = vmatprep.subr.mxu0 0.0
    %1339 = vmatpush1.msra.mxu0 0.0
    %1340 = vmatprep.subr.mxu0 0.0
    %1341 = vmatpush1.msra.mxu0 0.0
    %1342 = vmatprep.subr.mxu0 0.0
    %1343 = vmatpush1.msra.mxu0 0.0
    %1344 = vmatprep.mubr.f32.mxu0 0.0
    %1345 = vmatmul.mubr.f32.gmra.mrb[0].mxu0 %v1278
    %v1346 = vpop.f32.mrb[0].mxu0
    %v1347 = vadd.f32 0.0, %v1346
    %v1348 = vpop.f32.mrb[0].mxu0
    %1349 = vdwg.mxu0
    %v1351 = vrot.slane %v1347, 5
    %v1353 = vadd.f32 %v968, %v1351
    %v1354 = vtanh.pop %v1353
    %v1355 = vmul.f32 %v1354, 0.5
    %v1356 = vadd.f32 %v1355, 0.5
    %v1358 = vrot.slane %v1267, 7
    %v1360 = vmul.f32 %v1356, %v1358
    %1362 = vrot.lane.b32.xlu0 %v1354, 64
    %v1363 = vpop.permute.xlu0 %1362
    %v1365 = vmul.f32 %v1356, %v1363
    %1367 = vrot.lane.b32.xlu0 %v1365, 32
    %v1368 = vpop.permute.xlu0 %1367
    %v1370 = vadd.f32 %v1360, %v1368
    %v1371 = vtanh.pop %v1370
    %1373 = vrot.lane.b32.xlu0 %v1371, 64
    %v1374 = vpop.permute.xlu0 %1373
    %v1376 = vmul.f32 %v1356, %v1374
    %v1378 = vrot.slane %v1376, 3
    %1379 = vrot.lane.b32.xlu0 %v1378, 32
    %v1380 = vpop.permute.xlu0 %1379
    %v1381 = vsel %vm82, %v1380, 0
    %1383 = vmatprep.subr.mxu0 0.0
    %1384 = vmatpush1.msra.mxu0 %v129
    %1385 = vmatprep.subr.mxu0 0.0
    %1386 = vmatpush1.msra.mxu0 %v130
    %1387 = vmatprep.subr.mxu0 0.0
    %1388 = vmatpush1.msra.mxu0 %v131
    %1389 = vmatprep.subr.mxu0 0.0
    %1390 = vmatpush1.msra.mxu0 %v132
    %1391 = vmatprep.subr.mxu0 0.0
    %1392 = vmatpush1.msra.mxu0 0.0
    %1393 = vmatprep.subr.mxu0 0.0
    %1394 = vmatpush1.msra.mxu0 0.0
    %1395 = vmatprep.subr.mxu0 0.0
    %1396 = vmatpush1.msra.mxu0 0.0
    %1397 = vmatprep.subr.mxu0 0.0
    %1398 = vmatpush1.msra.mxu0 0.0
    %1399 = vmatprep.subr.mxu0 0.0
    %1400 = vmatpush1.msra.mxu0 0.0
    %1401 = vmatprep.subr.mxu0 0.0
    %1402 = vmatpush1.msra.mxu0 0.0
    %1403 = vmatprep.subr.mxu0 0.0
    %1404 = vmatpush1.msra.mxu0 0.0
    %1405 = vmatprep.subr.mxu0 0.0
    %1406 = vmatpush1.msra.mxu0 0.0
    %1407 = vmatprep.subr.mxu0 0.0
    %1408 = vmatpush1.msra.mxu0 0.0
    %1409 = vmatprep.subr.mxu0 0.0
    %1410 = vmatpush1.msra.mxu0 0.0
    %1411 = vmatprep.subr.mxu0 0.0
    %1412 = vmatpush1.msra.mxu0 0.0
    %1413 = vmatprep.subr.mxu0 0.0
    %1414 = vmatpush1.msra.mxu0 0.0
    %1415 = vmatprep.subr.mxu0 0.0
    %1416 = vmatpush1.msra.mxu0 0.0
    %1417 = vmatprep.subr.mxu0 0.0
    %1418 = vmatpush1.msra.mxu0 0.0
    %1419 = vmatprep.subr.mxu0 0.0
    %1420 = vmatpush1.msra.mxu0 0.0
    %1421 = vmatprep.subr.mxu0 0.0
    %1422 = vmatpush1.msra.mxu0 0.0
    %1423 = vmatprep.subr.mxu0 0.0
    %1424 = vmatpush1.msra.mxu0 0.0
    %1425 = vmatprep.subr.mxu0 0.0
    %1426 = vmatpush1.msra.mxu0 0.0
    %1427 = vmatprep.subr.mxu0 0.0
    %1428 = vmatpush1.msra.mxu0 0.0
    %1429 = vmatprep.subr.mxu0 0.0
    %1430 = vmatpush1.msra.mxu0 0.0
    %1431 = vmatprep.subr.mxu0 0.0
    %1432 = vmatpush1.msra.mxu0 0.0
    %1433 = vmatprep.subr.mxu0 0.0
    %1434 = vmatpush1.msra.mxu0 0.0
    %1435 = vmatprep.subr.mxu0 0.0
    %1436 = vmatpush1.msra.mxu0 0.0
    %1437 = vmatprep.subr.mxu0 0.0
    %1438 = vmatpush1.msra.mxu0 0.0
    %1439 = vmatprep.subr.mxu0 0.0
    %1440 = vmatpush1.msra.mxu0 0.0
    %1441 = vmatprep.subr.mxu0 0.0
    %1442 = vmatpush1.msra.mxu0 0.0
    %1443 = vmatprep.subr.mxu0 0.0
    %1444 = vmatpush1.msra.mxu0 0.0
    %1445 = vmatprep.subr.mxu0 0.0
    %1446 = vmatpush1.msra.mxu0 0.0
    %1447 = vmatprep.mubr.f32.mxu0 0.0
    %1448 = vmatmul.mubr.f32.gmra.mrb[0].mxu0 %v1381
    %v1449 = vpop.f32.mrb[0].mxu0
    %v1450 = vadd.f32 0.0, %v1449
    %v1451 = vpop.f32.mrb[0].mxu0
    %1452 = vdwg.mxu0
    %v1454 = vrot.slane %v1450, 4
    %v1456 = vadd.f32 %v968, %v1454
    %v1457 = vtanh.pop %v1456
    %v1458 = vmul.f32 %v1457, 0.5
    %v1459 = vadd.f32 %v1458, 0.5
    %v1461 = vrot.slane %v1370, 7
    %v1463 = vmul.f32 %v1459, %v1461
    %1465 = vrot.lane.b32.xlu0 %v1457, 64
    %v1466 = vpop.permute.xlu0 %1465
    %v1468 = vmul.f32 %v1459, %v1466
    %1470 = vrot.lane.b32.xlu0 %v1468, 32
    %v1471 = vpop.permute.xlu0 %1470
    %v1473 = vadd.f32 %v1463, %v1471
    %v1474 = vtanh.pop %v1473
    %1476 = vrot.lane.b32.xlu0 %v1474, 64
    %v1477 = vpop.permute.xlu0 %1476
    %v1479 = vmul.f32 %v1459, %v1477
    %v1481 = vrot.slane %v1479, 4
    %1482 = vrot.lane.b32.xlu0 %v1481, 32
    %v1483 = vpop.permute.xlu0 %1482
    %v1484 = vsel %vm82, %v1483, 0
    %1486 = vmatprep.subr.mxu0 0.0
    %1487 = vmatpush1.msra.mxu0 %v129
    %1488 = vmatprep.subr.mxu0 0.0
    %1489 = vmatpush1.msra.mxu0 %v130
    %1490 = vmatprep.subr.mxu0 0.0
    %1491 = vmatpush1.msra.mxu0 %v131
    %1492 = vmatprep.subr.mxu0 0.0
    %1493 = vmatpush1.msra.mxu0 %v132
    %1494 = vmatprep.subr.mxu0 0.0
    %1495 = vmatpush1.msra.mxu0 0.0
    %1496 = vmatprep.subr.mxu0 0.0
    %1497 = vmatpush1.msra.mxu0 0.0
    %1498 = vmatprep.subr.mxu0 0.0
    %1499 = vmatpush1.msra.mxu0 0.0
    %1500 = vmatprep.subr.mxu0 0.0
    %1501 = vmatpush1.msra.mxu0 0.0
    %1502 = vmatprep.subr.mxu0 0.0
    %1503 = vmatpush1.msra.mxu0 0.0
    %1504 = vmatprep.subr.mxu0 0.0
    %1505 = vmatpush1.msra.mxu0 0.0
    %1506 = vmatprep.subr.mxu0 0.0
    %1507 = vmatpush1.msra.mxu0 0.0
    %1508 = vmatprep.subr.mxu0 0.0
    %1509 = vmatpush1.msra.mxu0 0.0
    %1510 = vmatprep.subr.mxu0 0.0
    %1511 = vmatpush1.msra.mxu0 0.0
    %1512 = vmatprep.subr.mxu0 0.0
    %1513 = vmatpush1.msra.mxu0 0.0
    %1514 = vmatprep.subr.mxu0 0.0
    %1515 = vmatpush1.msra.mxu0 0.0
    %1516 = vmatprep.subr.mxu0 0.0
    %1517 = vmatpush1.msra.mxu0 0.0
    %1518 = vmatprep.subr.mxu0 0.0
    %1519 = vmatpush1.msra.mxu0 0.0
    %1520 = vmatprep.subr.mxu0 0.0
    %1521 = vmatpush1.msra.mxu0 0.0
    %1522 = vmatprep.subr.mxu0 0.0
    %1523 = vmatpush1.msra.mxu0 0.0
    %1524 = vmatprep.subr.mxu0 0.0
    %1525 = vmatpush1.msra.mxu0 0.0
    %1526 = vmatprep.subr.mxu0 0.0
    %1527 = vmatpush1.msra.mxu0 0.0
    %1528 = vmatprep.subr.mxu0 0.0
    %1529 = vmatpush1.msra.mxu0 0.0
    %1530 = vmatprep.subr.mxu0 0.0
    %1531 = vmatpush1.msra.mxu0 0.0
    %1532 = vmatprep.subr.mxu0 0.0
    %1533 = vmatpush1.msra.mxu0 0.0
    %1534 = vmatprep.subr.mxu0 0.0
    %1535 = vmatpush1.msra.mxu0 0.0
    %1536 = vmatprep.subr.mxu0 0.0
    %1537 = vmatpush1.msra.mxu0 0.0
    %1538 = vmatprep.subr.mxu0 0.0
    %1539 = vmatpush1.msra.mxu0 0.0
    %1540 = vmatprep.subr.mxu0 0.0
    %1541 = vmatpush1.msra.mxu0 0.0
    %1542 = vmatprep.subr.mxu0 0.0
    %1543 = vmatpush1.msra.mxu0 0.0
    %1544 = vmatprep.subr.mxu0 0.0
    %1545 = vmatpush1.msra.mxu0 0.0
    %1546 = vmatprep.subr.mxu0 0.0
    %1547 = vmatpush1.msra.mxu0 0.0
    %1548 = vmatprep.subr.mxu0 0.0
    %1549 = vmatpush1.msra.mxu0 0.0
    %1550 = vmatprep.mubr.f32.mxu0 0.0
    %1551 = vmatmul.mubr.f32.gmra.mrb[0].mxu0 %v1484
    %v1552 = vpop.f32.mrb[0].mxu0
    %v1553 = vadd.f32 0.0, %v1552
    %v1554 = vpop.f32.mrb[0].mxu0
    %1555 = vdwg.mxu0
    %v1557 = vrot.slane %v1553, 3
    %v1559 = vadd.f32 %v968, %v1557
    %v1560 = vtanh.pop %v1559
    %v1561 = vmul.f32 %v1560, 0.5
    %v1562 = vadd.f32 %v1561, 0.5
    %v1564 = vrot.slane %v1473, 7
    %v1566 = vmul.f32 %v1562, %v1564
    %1568 = vrot.lane.b32.xlu0 %v1560, 64
    %v1569 = vpop.permute.xlu0 %1568
    %v1571 = vmul.f32 %v1562, %v1569
    %1573 = vrot.lane.b32.xlu0 %v1571, 32
    %v1574 = vpop.permute.xlu0 %1573
    %v1576 = vadd.f32 %v1566, %v1574
    %v1577 = vtanh.pop %v1576
    %1579 = vrot.lane.b32.xlu0 %v1577, 64
    %v1580 = vpop.permute.xlu0 %1579
    %v1582 = vmul.f32 %v1562, %v1580
    %v1584 = vrot.slane %v1582, 5
    %1585 = vrot.lane.b32.xlu0 %v1584, 32
    %v1586 = vpop.permute.xlu0 %1585
    %v1587 = vsel %vm82, %v1586, 0
    %1589 = vmatprep.subr.mxu0 0.0
    %1590 = vmatpush1.msra.mxu0 %v129
    %1591 = vmatprep.subr.mxu0 0.0
    %1592 = vmatpush1.msra.mxu0 %v130
    %1593 = vmatprep.subr.mxu0 0.0
    %1594 = vmatpush1.msra.mxu0 %v131
    %1595 = vmatprep.subr.mxu0 0.0
    %1596 = vmatpush1.msra.mxu0 %v132
    %1597 = vmatprep.subr.mxu0 0.0
    %1598 = vmatpush1.msra.mxu0 0.0
    %1599 = vmatprep.subr.mxu0 0.0
    %1600 = vmatpush1.msra.mxu0 0.0
    %1601 = vmatprep.subr.mxu0 0.0
    %1602 = vmatpush1.msra.mxu0 0.0
    %1603 = vmatprep.subr.mxu0 0.0
    %1604 = vmatpush1.msra.mxu0 0.0
    %1605 = vmatprep.subr.mxu0 0.0
    %1606 = vmatpush1.msra.mxu0 0.0
    %1607 = vmatprep.subr.mxu0 0.0
    %1608 = vmatpush1.msra.mxu0 0.0
    %1609 = vmatprep.subr.mxu0 0.0
    %1610 = vmatpush1.msra.mxu0 0.0
    %1611 = vmatprep.subr.mxu0 0.0
    %1612 = vmatpush1.msra.mxu0 0.0
    %1613 = vmatprep.subr.mxu0 0.0
    %1614 = vmatpush1.msra.mxu0 0.0
    %1615 = vmatprep.subr.mxu0 0.0
    %1616 = vmatpush1.msra.mxu0 0.0
    %1617 = vmatprep.subr.mxu0 0.0
    %1618 = vmatpush1.msra.mxu0 0.0
    %1619 = vmatprep.subr.mxu0 0.0
    %1620 = vmatpush1.msra.mxu0 0.0
    %1621 = vmatprep.subr.mxu0 0.0
    %1622 = vmatpush1.msra.mxu0 0.0
    %1623 = vmatprep.subr.mxu0 0.0
    %1624 = vmatpush1.msra.mxu0 0.0
    %1625 = vmatprep.subr.mxu0 0.0
    %1626 = vmatpush1.msra.mxu0 0.0
    %1627 = vmatprep.subr.mxu0 0.0
    %1628 = vmatpush1.msra.mxu0 0.0
    %1629 = vmatprep.subr.mxu0 0.0
    %1630 = vmatpush1.msra.mxu0 0.0
    %1631 = vmatprep.subr.mxu0 0.0
    %1632 = vmatpush1.msra.mxu0 0.0
    %1633 = vmatprep.subr.mxu0 0.0
    %1634 = vmatpush1.msra.mxu0 0.0
    %1635 = vmatprep.subr.mxu0 0.0
    %1636 = vmatpush1.msra.mxu0 0.0
    %1637 = vmatprep.subr.mxu0 0.0
    %1638 = vmatpush1.msra.mxu0 0.0
    %1639 = vmatprep.subr.mxu0 0.0
    %1640 = vmatpush1.msra.mxu0 0.0
    %1641 = vmatprep.subr.mxu0 0.0
    %1642 = vmatpush1.msra.mxu0 0.0
    %1643 = vmatprep.subr.mxu0 0.0
    %1644 = vmatpush1.msra.mxu0 0.0
    %1645 = vmatprep.subr.mxu0 0.0
    %1646 = vmatpush1.msra.mxu0 0.0
    %1647 = vmatprep.subr.mxu0 0.0
    %1648 = vmatpush1.msra.mxu0 0.0
    %1649 = vmatprep.subr.mxu0 0.0
    %1650 = vmatpush1.msra.mxu0 0.0
    %1651 = vmatprep.subr.mxu0 0.0
    %1652 = vmatpush1.msra.mxu0 0.0
    %1653 = vmatprep.mubr.f32.mxu0 0.0
    %1654 = vmatmul.mubr.f32.gmra.mrb[0].mxu0 %v1587
    %v1655 = vpop.f32.mrb[0].mxu0
    %v1656 = vadd.f32 0.0, %v1655
    %v1657 = vpop.f32.mrb[0].mxu0
    %1658 = vdwg.mxu0
    %v1660 = vrot.slane %v1656, 2
    %v1662 = vadd.f32 %v968, %v1660
    %v1663 = vtanh.pop %v1662
    %v1664 = vmul.f32 %v1663, 0.5
    %v1665 = vadd.f32 %v1664, 0.5
    %v1667 = vrot.slane %v1576, 7
    %v1669 = vmul.f32 %v1665, %v1667
    %1671 = vrot.lane.b32.xlu0 %v1663, 64
    %v1672 = vpop.permute.xlu0 %1671
    %v1674 = vmul.f32 %v1665, %v1672
    %1676 = vrot.lane.b32.xlu0 %v1674, 32
    %v1677 = vpop.permute.xlu0 %1676
    %v1679 = vadd.f32 %v1669, %v1677
    %v1680 = vtanh.pop %v1679
    %1682 = vrot.lane.b32.xlu0 %v1680, 64
    %v1683 = vpop.permute.xlu0 %1682
    %v1685 = vmul.f32 %v1665, %v1683
    %v1687 = vrot.slane %v1685, 6
    %1688 = vrot.lane.b32.xlu0 %v1687, 32
    %v1689 = vpop.permute.xlu0 %1688
    %v1690 = vsel %vm82, %v1689, 0
    %1692 = vmatprep.subr.mxu0 0.0
    %1693 = vmatpush1.msra.mxu0 %v129
    %1694 = vmatprep.subr.mxu0 0.0
    %1695 = vmatpush1.msra.mxu0 %v130
    %1696 = vmatprep.subr.mxu0 0.0
    %1697 = vmatpush1.msra.mxu0 %v131
    %1698 = vmatprep.subr.mxu0 0.0
    %1699 = vmatpush1.msra.mxu0 %v132
    %1700 = vmatprep.subr.mxu0 0.0
    %1701 = vmatpush1.msra.mxu0 0.0
    %1702 = vmatprep.subr.mxu0 0.0
    %1703 = vmatpush1.msra.mxu0 0.0
    %1704 = vmatprep.subr.mxu0 0.0
    %1705 = vmatpush1.msra.mxu0 0.0
    %1706 = vmatprep.subr.mxu0 0.0
    %1707 = vmatpush1.msra.mxu0 0.0
    %1708 = vmatprep.subr.mxu0 0.0
    %1709 = vmatpush1.msra.mxu0 0.0
    %1710 = vmatprep.subr.mxu0 0.0
    %1711 = vmatpush1.msra.mxu0 0.0
    %1712 = vmatprep.subr.mxu0 0.0
    %1713 = vmatpush1.msra.mxu0 0.0
    %1714 = vmatprep.subr.mxu0 0.0
    %1715 = vmatpush1.msra.mxu0 0.0
    %1716 = vmatprep.subr.mxu0 0.0
    %1717 = vmatpush1.msra.mxu0 0.0
    %1718 = vmatprep.subr.mxu0 0.0
    %1719 = vmatpush1.msra.mxu0 0.0
    %1720 = vmatprep.subr.mxu0 0.0
    %1721 = vmatpush1.msra.mxu0 0.0
    %1722 = vmatprep.subr.mxu0 0.0
    %1723 = vmatpush1.msra.mxu0 0.0
    %1724 = vmatprep.subr.mxu0 0.0
    %1725 = vmatpush1.msra.mxu0 0.0
    %1726 = vmatprep.subr.mxu0 0.0
    %1727 = vmatpush1.msra.mxu0 0.0
    %1728 = vmatprep.subr.mxu0 0.0
    %1729 = vmatpush1.msra.mxu0 0.0
    %1730 = vmatprep.subr.mxu0 0.0
    %1731 = vmatpush1.msra.mxu0 0.0
    %1732 = vmatprep.subr.mxu0 0.0
    %1733 = vmatpush1.msra.mxu0 0.0
    %1734 = vmatprep.subr.mxu0 0.0
    %1735 = vmatpush1.msra.mxu0 0.0
    %1736 = vmatprep.subr.mxu0 0.0
    %1737 = vmatpush1.msra.mxu0 0.0
    %1738 = vmatprep.subr.mxu0 0.0
    %1739 = vmatpush1.msra.mxu0 0.0
    %1740 = vmatprep.subr.mxu0 0.0
    %1741 = vmatpush1.msra.mxu0 0.0
    %1742 = vmatprep.subr.mxu0 0.0
    %1743 = vmatpush1.msra.mxu0 0.0
    %1744 = vmatprep.subr.mxu0 0.0
    %1745 = vmatpush1.msra.mxu0 0.0
    %1746 = vmatprep.subr.mxu0 0.0
    %1747 = vmatpush1.msra.mxu0 0.0
    %1748 = vmatprep.subr.mxu0 0.0
    %1749 = vmatpush1.msra.mxu0 0.0
    %1750 = vmatprep.subr.mxu0 0.0
    %1751 = vmatpush1.msra.mxu0 0.0
    %1752 = vmatprep.subr.mxu0 0.0
    %1753 = vmatpush1.msra.mxu0 0.0
    %1754 = vmatprep.subr.mxu0 0.0
    %1755 = vmatpush1.msra.mxu0 0.0
    %1756 = vmatprep.mubr.f32.mxu0 0.0
    %1757 = vmatmul.mubr.f32.gmra.mrb[0].mxu0 %v1690
    %v1758 = vpop.f32.mrb[0].mxu0
    %v1759 = vadd.f32 0.0, %v1758
    %v1760 = vpop.f32.mrb[0].mxu0
    %1761 = vdwg.mxu0
    %v1763 = vrot.slane %v1759, 1
    %v1765 = vadd.f32 %v968, %v1763
    %v1766 = vtanh.pop %v1765
    %v1767 = vmul.f32 %v1766, 0.5
    %v1768 = vadd.f32 %v1767, 0.5
    %v1770 = vrot.slane %v1679, 7
    %v1772 = vmul.f32 %v1768, %v1770
    %1774 = vrot.lane.b32.xlu0 %v1766, 64
    %v1775 = vpop.permute.xlu0 %1774
    %v1777 = vmul.f32 %v1768, %v1775
    %1779 = vrot.lane.b32.xlu0 %v1777, 32
    %v1780 = vpop.permute.xlu0 %1779
    %v1782 = vadd.f32 %v1772, %v1780
    %v1783 = vtanh.pop %v1782
    %1785 = vrot.lane.b32.xlu0 %v1783, 64
    %v1786 = vpop.permute.xlu0 %1785
    %v1788 = vmul.f32 %v1768, %v1786
    %v1789 = vsel %vm948, %v1068, %v1170
    %v1790 = vsel %vm950, %v1789, %v1273
    %v1791 = vsel %vm952, %v1790, %v1376
    %v1792 = vsel %vm954, %v1791, %v1479
    %v1793 = vsel %vm956, %v1792, %v1582
    %v1794 = vsel %vm958, %v1793, %v1685
    %v1795 = vsel %vm960, %v1794, %v1788
    %1797 = vrot.lane.b32.xlu0 %v1795, 32
    %v1798 = vpop.permute.xlu0 %1797
    %s1800 = scalar_lea.vmem [#allocation3], 8
    %1801 = vst.msk [vmem:[%s1800] sm:$0xff] %vm82, %v1798
    %v1802 = vld [vmem:[#allocation3] sm:$0xff]
    %v1803 = vld [vmem:[#allocation3 + $0x8] sm:$0xff]
    %v1804 = vpack.c.bf16 %v1803, %v1802
    %v1805 = vld [vmem:[%s4] sm:$0xf]
    %v1806 = vld [vmem:[%s4 + $0x4] sm:$0xf]
    %v1807 = vld [vmem:[%s4 + $0x8] sm:$0xf]
    %v1808 = vld [vmem:[%s4 + $0xc] sm:$0xf]
    %v1809 = vld [vmem:[%s5] sm:$0x1]
    %v1811 = vlaneseq
    %v1812 = vshrl.u32 %v1811, 7
    %v1813 = vsub.s32 0, %v1812
    %v1814 = vrot.slane %v1809, %v1813
    %v1820 = vunpack.c.l.b16 %v1805
    %v1821 = vunpack.c.l.b16 %v1806
    %v1822 = vunpack.c.l.b16 %v1807
    %v1823 = vunpack.c.l.b16 %v1808
    %v1824 = vpack.c.b16 %v1821, %v1820
    %v1825 = vpack.c.b16 %v1823, %v1822
    %v1829 = vsel %vm82, %v1804, 0
    %1831 = vmatprep.subr.bf16.mxu0 0
    %1832 = vmatpush1.bf16.msra.mxu0 %v1824
    %1833 = vmatprep.subr.bf16.mxu0 0
    %1834 = vmatpush1.bf16.msra.mxu0 %v1825
    %1835 = vmatprep.subr.bf16.mxu0 0
    %1836 = vmatpush1.bf16.msra.mxu0 0
    %1837 = vmatprep.subr.bf16.mxu0 0
    %1838 = vmatpush1.bf16.msra.mxu0 0
    %1839 = vmatprep.subr.bf16.mxu0 0
    %1840 = vmatpush1.bf16.msra.mxu0 0
    %1841 = vmatprep.subr.bf16.mxu0 0
    %1842 = vmatpush1.bf16.msra.mxu0 0
    %1843 = vmatprep.subr.bf16.mxu0 0
    %1844 = vmatpush1.bf16.msra.mxu0 0
    %1845 = vmatprep.subr.bf16.mxu0 0
    %1846 = vmatpush1.bf16.msra.mxu0 0
    %1847 = vmatprep.subr.bf16.mxu0 0
    %1848 = vmatpush1.bf16.msra.mxu0 0
    %1849 = vmatprep.subr.bf16.mxu0 0
    %1850 = vmatpush1.bf16.msra.mxu0 0
    %1851 = vmatprep.subr.bf16.mxu0 0
    %1852 = vmatpush1.bf16.msra.mxu0 0
    %1853 = vmatprep.subr.bf16.mxu0 0
    %1854 = vmatpush1.bf16.msra.mxu0 0
    %1855 = vmatprep.subr.bf16.mxu0 0
    %1856 = vmatpush1.bf16.msra.mxu0 0
    %1857 = vmatprep.subr.bf16.mxu0 0
    %1858 = vmatpush1.bf16.msra.mxu0 0
    %1859 = vmatprep.subr.bf16.mxu0 0
    %1860 = vmatpush1.bf16.msra.mxu0 0
    %1861 = vmatprep.subr.bf16.mxu0 0
    %1862 = vmatpush1.bf16.msra.mxu0 0
    %1863 = vmatprep.mubr.bf16.mxu0 0
    %1864 = vmatmul.mubr.bf16.gmra.mrb[0].mxu0 %v1829
    %v1865 = vpop.f32.mrb[0].mxu0
    %v1866 = vadd.f32 %v1814, %v1865
    %v1867 = vpop.f32.mrb[0].mxu0
    %v1868 = vpop.f32.mrb[0].mxu0
    %v1869 = vadd.f32 %v1814, %v1868
    %v1870 = vpop.f32.mrb[0].mxu0
    %1871 = vdwg.mxu0
    %vm1872 = vcmask 64512
    %v1873 = vsel %vm1872, %v1866, -inf
    %1874 = vmax.xlane.f32.xlu0 %v1873
    %v1875 = vpop.xlane.xlu0 %1874
    %v1876 = vsel %vm1872, %v1869, -inf
    %1877 = vmax.xlane.f32.xlu0 %v1876
    %v1878 = vpop.xlane.xlu0 %1877
    %v1879 = vsub.f32 %v1866, %v1875
    %v1880 = vsub.f32 %v1869, %v1878
    %v1881 = vmul.f32 %v1879, 1.442695
    %v1882 = vpow.pop %v1881
    %v1883 = vmul.f32 %v1880, 1.442695
    %v1884 = vpow.pop %v1883
    %v1885 = vsel %vm1872, %v1882, 0.0
    %1886 = vadd.xlane.f32.xlu0 %v1885
    %v1887 = vpop.xlane.xlu0 %1886
    %v1888 = vsel %vm1872, %v1884, 0.0
    %1889 = vadd.xlane.f32.xlu0 %v1888
    %v1890 = vpop.xlane.xlu0 %1889
    %v1891 = vlog2.pop %v1887
    %v1892 = vmul.f32 %v1891, 0.6931472
    %v1893 = vlog2.pop %v1890
    %v1894 = vmul.f32 %v1893, 0.6931472
    %v1895 = vsub.f32 %v1879, %v1892
    %v1896 = vsub.f32 %v1880, %v1894
    %1897 = vst.msk [vmem:[%s6] sm:$0xff] %vm1872, %v1895
    %1898 = vst.msk [vmem:[%s6 + $0x8] sm:$0xff] %vm1872, %v1896
    // Predicated region
    $region34: #{tpu_custom_call.1} parent=1 // pred_check
      _
    $region35: #{tpu_custom_call.1} parent=1 // pred_check_branch
      %1900 = sbr.rel (0) target = $region37
    $region36: #{tpu_custom_call.1} parent=1 // pred_region
      _
    $region37: #{tpu_custom_call.1} parent=1 // pred_fallthru
      _
    // Predicated region
    $region38: #{tpu_custom_call.1} parent=1 // pred_check
      _
    $region39: #{tpu_custom_call.1} parent=1 // pred_check_branch
      %1902 = sbr.rel (0) target = $region41
    $region40: #{tpu_custom_call.1} parent=1 // pred_region
      _
    $region41: #{tpu_custom_call.1} parent=1 // pred_fallthru
      _
    %1903 = vsyncpa [#allocation5], 1
    %1904 = vsyncpa [#allocation7], 1

</llo_original>
